<compile_context>
chip_gen: v7x
topology: tpu7x:2x2x1
jax: 0.10.0
libtpu: 0.0.40
codegen_flags: <defaults>
</compile_context>

<pallas_src>
import functools

import jax
import jax.numpy as jnp
from jax.experimental import pallas as pl
from jax.experimental.pallas import tpu as pltpu


def _round_up(x, m):
    return (x + m - 1) // m * m


def _make_conv3d_relu_kernel(tap_offsets, cin_pad, p_tile, l_tile):
    """Kernel body: one depth-tile of one batch element."""

    def kernel(x_ref, w_ref, b_ref, o_ref, patches_ref):
        # x_ref:       (1, 1, CIN_PAD, L_tile)  flattened, zero-padded window (with depth halo)
        # w_ref:       (Cout, 27*CIN_PAD)       folded conv weights (zero rows for padded Cin)
        # b_ref:       (Cout, 1)                bias
        # o_ref:       (1, 1, Cout, P_tile)     lane-dense output slab
        # patches_ref: (27*CIN_PAD, P_tile)     VMEM scratch: im2col matrix
        slab = x_ref[0, 0, :, :]                              # one aligned full-slab load

        # Each tap (kd, kh, kw) is the slab shifted left by off = kd*Hp*Wp + kh*Wp + kw.
        # Derive it with a static XLU roll instead of a misaligned dynamic-lane load;
        # L_tile >= P_tile + max(off) guarantees the circular wrap never reaches the stored
        # P_tile lanes.  Each store is a full 8-sublane-aligned, lane-dense group (unmasked).
        for t, off in enumerate(tap_offsets):
            tap = slab if off == 0 else pltpu.roll(slab, l_tile - off, axis=1)
            patches_ref[t * cin_pad:(t + 1) * cin_pad, :] = tap[:, :p_tile]

        # One MXU GEMM with folded contraction K = 27*CIN_PAD, then fused bias + ReLU on the
        # lane-dense (Cout, P_tile) f32 accumulator.
        acc = jnp.dot(w_ref[...], patches_ref[...],
                      preferred_element_type=jnp.float32)
        acc = jnp.maximum(acc + b_ref[...].astype(jnp.float32), 0.0)
        o_ref[0, 0] = acc.astype(o_ref.dtype)

    return kernel


def post_activation_3d_nobn(x, weight, bias, *, padding=1, depth_tiles=None):
    """ReLU(Conv3d(x, weight, bias, padding)) matching PyTorch semantics.

    x: (N, Cin, D, H, W) NCDHW, weight: (Cout, Cin, K, K, K), bias: (Cout,).
    """
    N, Cin, D, H, W = x.shape
    Cout, Cin_w, K, Kh, Kw = weight.shape
    assert Cin_w == Cin and Kh == K and Kw == K
    p = padding

    Do, Ho, Wo = D + 2 * p - K + 1, H + 2 * p - K + 1, W + 2 * p - K + 1
    Dp, Hp, Wp = D + 2 * p, H + 2 * p, W + 2 * p
    HpWp = Hp * Wp

    # One grid step per TensorCore: T=1 when the batch alone already gives >= 2 parallel steps
    # (avoids 4 tiny steps of fixed overhead and all halo duplication); split depth only when
    # N == 1 so a v7x chip still gets one step per core.
    if depth_tiles is None:
        depth_tiles = 1 if N >= 2 else (2 if (Do % 2 == 0 and Do >= 2) else 1)
    T = depth_tiles if (depth_tiles >= 1 and Do % depth_tiles == 0) else 1
    TD = Do // T

    # Pad Cin to a full 8-row sublane group so each im2col tap store is unmasked and aligned.
    CIN_PAD = _round_up(max(Cin, 8), 8)

    # Geometry of the flattened-padded-volume implicit GEMM.
    max_off = (K - 1) * (HpWp + Wp + 1)                                  # largest tap offset
    P_tile = _round_up((TD - 1) * HpWp + (Ho - 1) * Wp + Wo, 128)        # lane-dense out width
    L_tile = _round_up(max_off + P_tile, 128)                            # window + roll slack
    win = (TD + K - 1) * HpWp                                            # real data per window
    assert L_tile >= P_tile + max_off                                    # rolls stay exact
    assert win <= L_tile

    # ---- wrapper-side layout plumbing (cheap; no big volume transposes) ----
    xp = jnp.pad(x, ((0, 0), (0, CIN_PAD - Cin), (p, p), (p, p), (p, p)))  # zero-pad once
    xp = xp.reshape(N, CIN_PAD, Dp, HpWp)
    if T == 1:
        x_tiles = jnp.pad(xp.reshape(N, CIN_PAD, Dp * HpWp),
                          ((0, 0), (0, 0), (0, L_tile - Dp * HpWp)))
        x_tiles = x_tiles[:, None]                                       # (N, 1, CIN_PAD, L_tile)
    else:
        # TODO(synk): replace overlapping-window materialization with pl.ANY + in-kernel DMA.
        tiles = []
        for t in range(T):
            w_t = xp[:, :, t * TD: t * TD + TD + K - 1, :].reshape(N, CIN_PAD, win)
            tiles.append(jnp.pad(w_t, ((0, 0), (0, 0), (0, L_tile - win))))
        x_tiles = jnp.stack(tiles, axis=1)                               # (N, T, CIN_PAD, L_tile)

    # (O, I, kd, kh, kw) -> (O, kd, kh, kw, I) -> zero-pad I -> (O, 27*CIN_PAD); row order
    # matches the im2col rows t*CIN_PAD + c, with zero rows for the padded channels so stale
    # scratch contents can never leak into the result.
    w5 = jnp.transpose(weight, (0, 2, 3, 4, 1))
    w5 = jnp.pad(w5, ((0, 0), (0, 0), (0, 0), (0, 0), (0, CIN_PAD - Cin)))
    w2d = w5.reshape(Cout, K * K * K * CIN_PAD)
    b2d = bias.reshape(Cout, 1).astype(jnp.float32)

    tap_offsets = tuple(kd * HpWp + kh * Wp + kw
                        for kd in range(K) for kh in range(K) for kw in range(K))
    kernel = _make_conv3d_relu_kernel(tap_offsets, CIN_PAD, P_tile, L_tile)

    out_tiles = pl.pallas_call(
        kernel,
        out_shape=jax.ShapeDtypeStruct((N, T, Cout, P_tile), x.dtype),
        grid=(N, T),
        in_specs=[
            pl.BlockSpec((1, 1, CIN_PAD, L_tile), lambda n, t: (n, t, 0, 0)),
            pl.BlockSpec((Cout, K * K * K * CIN_PAD), lambda n, t: (0, 0)),
            pl.BlockSpec((Cout, 1), lambda n, t: (0, 0)),
        ],
        out_specs=pl.BlockSpec((1, 1, Cout, P_tile), lambda n, t: (n, t, 0, 0)),
        scratch_shapes=[pltpu.VMEM((K * K * K * CIN_PAD, P_tile), x.dtype)],
        compiler_params=pltpu.CompilerParams(
            dimension_semantics=("parallel", "parallel")),
    )(x_tiles, w2d, b2d)

    # ---- extract valid voxels: lane j = dd*Hp*Wp + h*Wp + w (pure layout plumbing) ----
    need = TD * HpWp
    if P_tile < need:
        out_tiles = jnp.pad(out_tiles, ((0, 0), (0, 0), (0, 0), (0, need - P_tile)))
    out = out_tiles[..., :need].reshape(N, T, Cout, TD, Hp, Wp)[..., :Ho, :Wo]
    out = jnp.transpose(out, (0, 2, 1, 3, 4, 5)).reshape(N, Cout, Do, Ho, Wo)
    return out


if __name__ == "__main__":
    # Small shapes consistent with the module: batch=2, in=4, out=8, 8^3 volume, k=3, p=1.
    N, Cin, Cout, D, H, W, K = 2, 4, 8, 8, 8, 8, 3

    key = jax.random.PRNGKey(0)
    kx, kw_key, kb = jax.random.split(key, 3)

    x = jax.random.normal(kx, (N, Cin, D, H, W), dtype=jnp.float32)

    # PyTorch-style init: U(-bound, bound), bound = 1/sqrt(fan_in)
    fan_in = Cin * K * K * K
    bound = 1.0 / (fan_in ** 0.5)
    weight = jax.random.uniform(kw_key, (Cout, Cin, K, K, K),
                                minval=-bound, maxval=bound, dtype=jnp.float32)
    bias = jax.random.uniform(kb, (Cout,), minval=-bound, maxval=bound,
                              dtype=jnp.float32)

    fwd = jax.jit(functools.partial(post_activation_3d_nobn, padding=1))
    out = jax.block_until_ready(fwd(x, weight, bias))

    # Pure-JAX reference (XLA conv) for correctness.
    ref = jax.lax.conv_general_dilated(
        x, weight, window_strides=(1, 1, 1),
        padding=((1, 1), (1, 1), (1, 1)),
        dimension_numbers=("NCDHW", "OIDHW", "NCDHW"))
    ref = jax.nn.relu(ref + bias[None, :, None, None, None])

    assert out.shape == (N, Cout, D, H, W), out.shape
    max_err = float(jnp.max(jnp.abs(out - ref)))
    assert jnp.allclose(out, ref, atol=2e-4, rtol=2e-4), max_err

    print("KERNEL_OK")
</pallas_src>

<mosaic_0001>
module attributes {stable_mosaic.version = 11 : i64} {
  func.func @kernel(%arg0: i32, %arg1: i32, %arg2: memref<1x1x8x1152xf32, #tpu.memory_space<vmem>>, %arg3: memref<8x216xf32, #tpu.memory_space<vmem>>, %arg4: memref<8x1xf32, #tpu.memory_space<vmem>>, %arg5: memref<1x1x8x896xf32, #tpu.memory_space<vmem>>, %arg6: memref<216x896xf32, #tpu.memory_space<vmem>>) attributes {dimension_semantics = [#tpu.dimension_semantics<parallel>, #tpu.dimension_semantics<parallel>], iteration_bounds = array<i64: 2, 1>, scalar_prefetch = 0 : i64, scratch_operands = 1 : i64, tpu.core_type = #tpu.core_type<tc>, window_params = [{transform_indices = @transform_0, window_bounds = array<i64: 1, 1, 8, 1152>}, {pipeline_mode = #tpu.pipeline_mode<synchronous>, transform_indices = @transform_1, window_bounds = array<i64: 8, 216>}, {pipeline_mode = #tpu.pipeline_mode<synchronous>, transform_indices = @transform_2, window_bounds = array<i64: 8, 1>}, {transform_indices = @transform_3, window_bounds = array<i64: 1, 1, 8, 896>}]} {
    %c0 = arith.constant 0 : index
    %c0_0 = arith.constant 0 : index
    %c0_1 = arith.constant 0 : index
    %c0_2 = arith.constant 0 : index
    %0 = vector.load %arg2[%c0, %c0_0, %c0_1, %c0_2] : memref<1x1x8x1152xf32, #tpu.memory_space<vmem>>, vector<1x1x8x1152xf32>
    %1 = vector.shape_cast %0 : vector<1x1x8x1152xf32> to vector<8x1152xf32>
    %2 = vector.extract_strided_slice %1 {offsets = [0, 0], sizes = [8, 896], strides = [1, 1]} : vector<8x1152xf32> to vector<8x896xf32>
    %c0_3 = arith.constant 0 : index
    %c0_4 = arith.constant 0 : index
    %3 = vector.load %arg6[%c0_3, %c0_4] : memref<216x896xf32, #tpu.memory_space<vmem>>, vector<8x896xf32>
    tpu.vector_store %arg6[%c0_3, %c0_4], %2 {strides = array<i32>} : memref<216x896xf32, #tpu.memory_space<vmem>>, vector<8x896xf32>,
    %c1151_i32 = arith.constant 1151 : i32
    %4 = tpu.dynamic_rotate %1 by %c1151_i32 dim 1 : vector<8x1152xf32>, i32 -> vector<8x1152xf32>
    %5 = vector.extract_strided_slice %4 {offsets = [0, 0], sizes = [8, 896], strides = [1, 1]} : vector<8x1152xf32> to vector<8x896xf32>
    %c8 = arith.constant 8 : index
    %c0_5 = arith.constant 0 : index
    %6 = vector.load %arg6[%c8, %c0_5] : memref<216x896xf32, #tpu.memory_space<vmem>>, vector<8x896xf32>
    tpu.vector_store %arg6[%c8, %c0_5], %5 {strides = array<i32>} : memref<216x896xf32, #tpu.memory_space<vmem>>, vector<8x896xf32>,
    %c1150_i32 = arith.constant 1150 : i32
    %7 = tpu.dynamic_rotate %1 by %c1150_i32 dim 1 : vector<8x1152xf32>, i32 -> vector<8x1152xf32>
    %8 = vector.extract_strided_slice %7 {offsets = [0, 0], sizes = [8, 896], strides = [1, 1]} : vector<8x1152xf32> to vector<8x896xf32>
    %c16 = arith.constant 16 : index
    %c0_6 = arith.constant 0 : index
    %9 = vector.load %arg6[%c16, %c0_6] : memref<216x896xf32, #tpu.memory_space<vmem>>, vector<8x896xf32>
    tpu.vector_store %arg6[%c16, %c0_6], %8 {strides = array<i32>} : memref<216x896xf32, #tpu.memory_space<vmem>>, vector<8x896xf32>,
    %c1142_i32 = arith.constant 1142 : i32
    %10 = tpu.dynamic_rotate %1 by %c1142_i32 dim 1 : vector<8x1152xf32>, i32 -> vector<8x1152xf32>
    %11 = vector.extract_strided_slice %10 {offsets = [0, 0], sizes = [8, 896], strides = [1, 1]} : vector<8x1152xf32> to vector<8x896xf32>
    %c24 = arith.constant 24 : index
    %c0_7 = arith.constant 0 : index
    %12 = vector.load %arg6[%c24, %c0_7] : memref<216x896xf32, #tpu.memory_space<vmem>>, vector<8x896xf32>
    tpu.vector_store %arg6[%c24, %c0_7], %11 {strides = array<i32>} : memref<216x896xf32, #tpu.memory_space<vmem>>, vector<8x896xf32>,
    %c1141_i32 = arith.constant 1141 : i32
    %13 = tpu.dynamic_rotate %1 by %c1141_i32 dim 1 : vector<8x1152xf32>, i32 -> vector<8x1152xf32>
    %14 = vector.extract_strided_slice %13 {offsets = [0, 0], sizes = [8, 896], strides = [1, 1]} : vector<8x1152xf32> to vector<8x896xf32>
    %c32 = arith.constant 32 : index
    %c0_8 = arith.constant 0 : index
    %15 = vector.load %arg6[%c32, %c0_8] : memref<216x896xf32, #tpu.memory_space<vmem>>, vector<8x896xf32>
    tpu.vector_store %arg6[%c32, %c0_8], %14 {strides = array<i32>} : memref<216x896xf32, #tpu.memory_space<vmem>>, vector<8x896xf32>,
    %c1140_i32 = arith.constant 1140 : i32
    %16 = tpu.dynamic_rotate %1 by %c1140_i32 dim 1 : vector<8x1152xf32>, i32 -> vector<8x1152xf32>
    %17 = vector.extract_strided_slice %16 {offsets = [0, 0], sizes = [8, 896], strides = [1, 1]} : vector<8x1152xf32> to vector<8x896xf32>
    %c40 = arith.constant 40 : index
    %c0_9 = arith.constant 0 : index
    %18 = vector.load %arg6[%c40, %c0_9] : memref<216x896xf32, #tpu.memory_space<vmem>>, vector<8x896xf32>
    tpu.vector_store %arg6[%c40, %c0_9], %17 {strides = array<i32>} : memref<216x896xf32, #tpu.memory_space<vmem>>, vector<8x896xf32>,
    %c1132_i32 = arith.constant 1132 : i32
    %19 = tpu.dynamic_rotate %1 by %c1132_i32 dim 1 : vector<8x1152xf32>, i32 -> vector<8x1152xf32>
    %20 = vector.extract_strided_slice %19 {offsets = [0, 0], sizes = [8, 896], strides = [1, 1]} : vector<8x1152xf32> to vector<8x896xf32>
    %c48 = arith.constant 48 : index
    %c0_10 = arith.constant 0 : index
    %21 = vector.load %arg6[%c48, %c0_10] : memref<216x896xf32, #tpu.memory_space<vmem>>, vector<8x896xf32>
    tpu.vector_store %arg6[%c48, %c0_10], %20 {strides = array<i32>} : memref<216x896xf32, #tpu.memory_space<vmem>>, vector<8x896xf32>,
    %c1131_i32 = arith.constant 1131 : i32
    %22 = tpu.dynamic_rotate %1 by %c1131_i32 dim 1 : vector<8x1152xf32>, i32 -> vector<8x1152xf32>
    %23 = vector.extract_strided_slice %22 {offsets = [0, 0], sizes = [8, 896], strides = [1, 1]} : vector<8x1152xf32> to vector<8x896xf32>
    %c56 = arith.constant 56 : index
    %c0_11 = arith.constant 0 : index
    %24 = vector.load %arg6[%c56, %c0_11] : memref<216x896xf32, #tpu.memory_space<vmem>>, vector<8x896xf32>
    tpu.vector_store %arg6[%c56, %c0_11], %23 {strides = array<i32>} : memref<216x896xf32, #tpu.memory_space<vmem>>, vector<8x896xf32>,
    %c1130_i32 = arith.constant 1130 : i32
    %25 = tpu.dynamic_rotate %1 by %c1130_i32 dim 1 : vector<8x1152xf32>, i32 -> vector<8x1152xf32>
    %26 = vector.extract_strided_slice %25 {offsets = [0, 0], sizes = [8, 896], strides = [1, 1]} : vector<8x1152xf32> to vector<8x896xf32>
    %c64 = arith.constant 64 : index
    %c0_12 = arith.constant 0 : index
    %27 = vector.load %arg6[%c64, %c0_12] : memref<216x896xf32, #tpu.memory_space<vmem>>, vector<8x896xf32>
    tpu.vector_store %arg6[%c64, %c0_12], %26 {strides = array<i32>} : memref<216x896xf32, #tpu.memory_space<vmem>>, vector<8x896xf32>,
    %c1052_i32 = arith.constant 1052 : i32
    %28 = tpu.dynamic_rotate %1 by %c1052_i32 dim 1 : vector<8x1152xf32>, i32 -> vector<8x1152xf32>
    %29 = vector.extract_strided_slice %28 {offsets = [0, 0], sizes = [8, 896], strides = [1, 1]} : vector<8x1152xf32> to vector<8x896xf32>
    %c72 = arith.constant 72 : index
    %c0_13 = arith.constant 0 : index
    %30 = vector.load %arg6[%c72, %c0_13] : memref<216x896xf32, #tpu.memory_space<vmem>>, vector<8x896xf32>
    tpu.vector_store %arg6[%c72, %c0_13], %29 {strides = array<i32>} : memref<216x896xf32, #tpu.memory_space<vmem>>, vector<8x896xf32>,
    %c1051_i32 = arith.constant 1051 : i32
    %31 = tpu.dynamic_rotate %1 by %c1051_i32 dim 1 : vector<8x1152xf32>, i32 -> vector<8x1152xf32>
    %32 = vector.extract_strided_slice %31 {offsets = [0, 0], sizes = [8, 896], strides = [1, 1]} : vector<8x1152xf32> to vector<8x896xf32>
    %c80 = arith.constant 80 : index
    %c0_14 = arith.constant 0 : index
    %33 = vector.load %arg6[%c80, %c0_14] : memref<216x896xf32, #tpu.memory_space<vmem>>, vector<8x896xf32>
    tpu.vector_store %arg6[%c80, %c0_14], %32 {strides = array<i32>} : memref<216x896xf32, #tpu.memory_space<vmem>>, vector<8x896xf32>,
    %c1050_i32 = arith.constant 1050 : i32
    %34 = tpu.dynamic_rotate %1 by %c1050_i32 dim 1 : vector<8x1152xf32>, i32 -> vector<8x1152xf32>
    %35 = vector.extract_strided_slice %34 {offsets = [0, 0], sizes = [8, 896], strides = [1, 1]} : vector<8x1152xf32> to vector<8x896xf32>
    %c88 = arith.constant 88 : index
    %c0_15 = arith.constant 0 : index
    %36 = vector.load %arg6[%c88, %c0_15] : memref<216x896xf32, #tpu.memory_space<vmem>>, vector<8x896xf32>
    tpu.vector_store %arg6[%c88, %c0_15], %35 {strides = array<i32>} : memref<216x896xf32, #tpu.memory_space<vmem>>, vector<8x896xf32>,
    %c1042_i32 = arith.constant 1042 : i32
    %37 = tpu.dynamic_rotate %1 by %c1042_i32 dim 1 : vector<8x1152xf32>, i32 -> vector<8x1152xf32>
    %38 = vector.extract_strided_slice %37 {offsets = [0, 0], sizes = [8, 896], strides = [1, 1]} : vector<8x1152xf32> to vector<8x896xf32>
    %c96 = arith.constant 96 : index
    %c0_16 = arith.constant 0 : index
    %39 = vector.load %arg6[%c96, %c0_16] : memref<216x896xf32, #tpu.memory_space<vmem>>, vector<8x896xf32>
    tpu.vector_store %arg6[%c96, %c0_16], %38 {strides = array<i32>} : memref<216x896xf32, #tpu.memory_space<vmem>>, vector<8x896xf32>,
    %c1041_i32 = arith.constant 1041 : i32
    %40 = tpu.dynamic_rotate %1 by %c1041_i32 dim 1 : vector<8x1152xf32>, i32 -> vector<8x1152xf32>
    %41 = vector.extract_strided_slice %40 {offsets = [0, 0], sizes = [8, 896], strides = [1, 1]} : vector<8x1152xf32> to vector<8x896xf32>
    %c104 = arith.constant 104 : index
    %c0_17 = arith.constant 0 : index
    %42 = vector.load %arg6[%c104, %c0_17] : memref<216x896xf32, #tpu.memory_space<vmem>>, vector<8x896xf32>
    tpu.vector_store %arg6[%c104, %c0_17], %41 {strides = array<i32>} : memref<216x896xf32, #tpu.memory_space<vmem>>, vector<8x896xf32>,
    %c1040_i32 = arith.constant 1040 : i32
    %43 = tpu.dynamic_rotate %1 by %c1040_i32 dim 1 : vector<8x1152xf32>, i32 -> vector<8x1152xf32>
    %44 = vector.extract_strided_slice %43 {offsets = [0, 0], sizes = [8, 896], strides = [1, 1]} : vector<8x1152xf32> to vector<8x896xf32>
    %c112 = arith.constant 112 : index
    %c0_18 = arith.constant 0 : index
    %45 = vector.load %arg6[%c112, %c0_18] : memref<216x896xf32, #tpu.memory_space<vmem>>, vector<8x896xf32>
    tpu.vector_store %arg6[%c112, %c0_18], %44 {strides = array<i32>} : memref<216x896xf32, #tpu.memory_space<vmem>>, vector<8x896xf32>,
    %c1032_i32 = arith.constant 1032 : i32
    %46 = tpu.dynamic_rotate %1 by %c1032_i32 dim 1 : vector<8x1152xf32>, i32 -> vector<8x1152xf32>
    %47 = vector.extract_strided_slice %46 {offsets = [0, 0], sizes = [8, 896], strides = [1, 1]} : vector<8x1152xf32> to vector<8x896xf32>
    %c120 = arith.constant 120 : index
    %c0_19 = arith.constant 0 : index
    %48 = vector.load %arg6[%c120, %c0_19] : memref<216x896xf32, #tpu.memory_space<vmem>>, vector<8x896xf32>
    tpu.vector_store %arg6[%c120, %c0_19], %47 {strides = array<i32>} : memref<216x896xf32, #tpu.memory_space<vmem>>, vector<8x896xf32>,
    %c1031_i32 = arith.constant 1031 : i32
    %49 = tpu.dynamic_rotate %1 by %c1031_i32 dim 1 : vector<8x1152xf32>, i32 -> vector<8x1152xf32>
    %50 = vector.extract_strided_slice %49 {offsets = [0, 0], sizes = [8, 896], strides = [1, 1]} : vector<8x1152xf32> to vector<8x896xf32>
    %c128 = arith.constant 128 : index
    %c0_20 = arith.constant 0 : index
    %51 = vector.load %arg6[%c128, %c0_20] : memref<216x896xf32, #tpu.memory_space<vmem>>, vector<8x896xf32>
    tpu.vector_store %arg6[%c128, %c0_20], %50 {strides = array<i32>} : memref<216x896xf32, #tpu.memory_space<vmem>>, vector<8x896xf32>,
    %c1030_i32 = arith.constant 1030 : i32
    %52 = tpu.dynamic_rotate %1 by %c1030_i32 dim 1 : vector<8x1152xf32>, i32 -> vector<8x1152xf32>
    %53 = vector.extract_strided_slice %52 {offsets = [0, 0], sizes = [8, 896], strides = [1, 1]} : vector<8x1152xf32> to vector<8x896xf32>
    %c136 = arith.constant 136 : index
    %c0_21 = arith.constant 0 : index
    %54 = vector.load %arg6[%c136, %c0_21] : memref<216x896xf32, #tpu.memory_space<vmem>>, vector<8x896xf32>
    tpu.vector_store %arg6[%c136, %c0_21], %53 {strides = array<i32>} : memref<216x896xf32, #tpu.memory_space<vmem>>, vector<8x896xf32>,
    %c952_i32 = arith.constant 952 : i32
    %55 = tpu.dynamic_rotate %1 by %c952_i32 dim 1 : vector<8x1152xf32>, i32 -> vector<8x1152xf32>
    %56 = vector.extract_strided_slice %55 {offsets = [0, 0], sizes = [8, 896], strides = [1, 1]} : vector<8x1152xf32> to vector<8x896xf32>
    %c144 = arith.constant 144 : index
    %c0_22 = arith.constant 0 : index
    %57 = vector.load %arg6[%c144, %c0_22] : memref<216x896xf32, #tpu.memory_space<vmem>>, vector<8x896xf32>
    tpu.vector_store %arg6[%c144, %c0_22], %56 {strides = array<i32>} : memref<216x896xf32, #tpu.memory_space<vmem>>, vector<8x896xf32>,
    %c951_i32 = arith.constant 951 : i32
    %58 = tpu.dynamic_rotate %1 by %c951_i32 dim 1 : vector<8x1152xf32>, i32 -> vector<8x1152xf32>
    %59 = vector.extract_strided_slice %58 {offsets = [0, 0], sizes = [8, 896], strides = [1, 1]} : vector<8x1152xf32> to vector<8x896xf32>
    %c152 = arith.constant 152 : index
    %c0_23 = arith.constant 0 : index
    %60 = vector.load %arg6[%c152, %c0_23] : memref<216x896xf32, #tpu.memory_space<vmem>>, vector<8x896xf32>
    tpu.vector_store %arg6[%c152, %c0_23], %59 {strides = array<i32>} : memref<216x896xf32, #tpu.memory_space<vmem>>, vector<8x896xf32>,
    %c950_i32 = arith.constant 950 : i32
    %61 = tpu.dynamic_rotate %1 by %c950_i32 dim 1 : vector<8x1152xf32>, i32 -> vector<8x1152xf32>
    %62 = vector.extract_strided_slice %61 {offsets = [0, 0], sizes = [8, 896], strides = [1, 1]} : vector<8x1152xf32> to vector<8x896xf32>
    %c160 = arith.constant 160 : index
    %c0_24 = arith.constant 0 : index
    %63 = vector.load %arg6[%c160, %c0_24] : memref<216x896xf32, #tpu.memory_space<vmem>>, vector<8x896xf32>
    tpu.vector_store %arg6[%c160, %c0_24], %62 {strides = array<i32>} : memref<216x896xf32, #tpu.memory_space<vmem>>, vector<8x896xf32>,
    %c942_i32 = arith.constant 942 : i32
    %64 = tpu.dynamic_rotate %1 by %c942_i32 dim 1 : vector<8x1152xf32>, i32 -> vector<8x1152xf32>
    %65 = vector.extract_strided_slice %64 {offsets = [0, 0], sizes = [8, 896], strides = [1, 1]} : vector<8x1152xf32> to vector<8x896xf32>
    %c168 = arith.constant 168 : index
    %c0_25 = arith.constant 0 : index
    %66 = vector.load %arg6[%c168, %c0_25] : memref<216x896xf32, #tpu.memory_space<vmem>>, vector<8x896xf32>
    tpu.vector_store %arg6[%c168, %c0_25], %65 {strides = array<i32>} : memref<216x896xf32, #tpu.memory_space<vmem>>, vector<8x896xf32>,
    %c941_i32 = arith.constant 941 : i32
    %67 = tpu.dynamic_rotate %1 by %c941_i32 dim 1 : vector<8x1152xf32>, i32 -> vector<8x1152xf32>
    %68 = vector.extract_strided_slice %67 {offsets = [0, 0], sizes = [8, 896], strides = [1, 1]} : vector<8x1152xf32> to vector<8x896xf32>
    %c176 = arith.constant 176 : index
    %c0_26 = arith.constant 0 : index
    %69 = vector.load %arg6[%c176, %c0_26] : memref<216x896xf32, #tpu.memory_space<vmem>>, vector<8x896xf32>
    tpu.vector_store %arg6[%c176, %c0_26], %68 {strides = array<i32>} : memref<216x896xf32, #tpu.memory_space<vmem>>, vector<8x896xf32>,
    %c940_i32 = arith.constant 940 : i32
    %70 = tpu.dynamic_rotate %1 by %c940_i32 dim 1 : vector<8x1152xf32>, i32 -> vector<8x1152xf32>
    %71 = vector.extract_strided_slice %70 {offsets = [0, 0], sizes = [8, 896], strides = [1, 1]} : vector<8x1152xf32> to vector<8x896xf32>
    %c184 = arith.constant 184 : index
    %c0_27 = arith.constant 0 : index
    %72 = vector.load %arg6[%c184, %c0_27] : memref<216x896xf32, #tpu.memory_space<vmem>>, vector<8x896xf32>
    tpu.vector_store %arg6[%c184, %c0_27], %71 {strides = array<i32>} : memref<216x896xf32, #tpu.memory_space<vmem>>, vector<8x896xf32>,
    %c932_i32 = arith.constant 932 : i32
    %73 = tpu.dynamic_rotate %1 by %c932_i32 dim 1 : vector<8x1152xf32>, i32 -> vector<8x1152xf32>
    %74 = vector.extract_strided_slice %73 {offsets = [0, 0], sizes = [8, 896], strides = [1, 1]} : vector<8x1152xf32> to vector<8x896xf32>
    %c192 = arith.constant 192 : index
    %c0_28 = arith.constant 0 : index
    %75 = vector.load %arg6[%c192, %c0_28] : memref<216x896xf32, #tpu.memory_space<vmem>>, vector<8x896xf32>
    tpu.vector_store %arg6[%c192, %c0_28], %74 {strides = array<i32>} : memref<216x896xf32, #tpu.memory_space<vmem>>, vector<8x896xf32>,
    %c931_i32 = arith.constant 931 : i32
    %76 = tpu.dynamic_rotate %1 by %c931_i32 dim 1 : vector<8x1152xf32>, i32 -> vector<8x1152xf32>
    %77 = vector.extract_strided_slice %76 {offsets = [0, 0], sizes = [8, 896], strides = [1, 1]} : vector<8x1152xf32> to vector<8x896xf32>
    %c200 = arith.constant 200 : index
    %c0_29 = arith.constant 0 : index
    %78 = vector.load %arg6[%c200, %c0_29] : memref<216x896xf32, #tpu.memory_space<vmem>>, vector<8x896xf32>
    tpu.vector_store %arg6[%c200, %c0_29], %77 {strides = array<i32>} : memref<216x896xf32, #tpu.memory_space<vmem>>, vector<8x896xf32>,
    %c930_i32 = arith.constant 930 : i32
    %79 = tpu.dynamic_rotate %1 by %c930_i32 dim 1 : vector<8x1152xf32>, i32 -> vector<8x1152xf32>
    %80 = vector.extract_strided_slice %79 {offsets = [0, 0], sizes = [8, 896], strides = [1, 1]} : vector<8x1152xf32> to vector<8x896xf32>
    %c208 = arith.constant 208 : index
    %c0_30 = arith.constant 0 : index
    %81 = vector.load %arg6[%c208, %c0_30] : memref<216x896xf32, #tpu.memory_space<vmem>>, vector<8x896xf32>
    tpu.vector_store %arg6[%c208, %c0_30], %80 {strides = array<i32>} : memref<216x896xf32, #tpu.memory_space<vmem>>, vector<8x896xf32>,
    %c0_31 = arith.constant 0 : index
    %c0_32 = arith.constant 0 : index
    %82 = vector.load %arg3[%c0_31, %c0_32] : memref<8x216xf32, #tpu.memory_space<vmem>>, vector<8x216xf32>
    %c0_33 = arith.constant 0 : index
    %c0_34 = arith.constant 0 : index
    %83 = vector.load %arg6[%c0_33, %c0_34] : memref<216x896xf32, #tpu.memory_space<vmem>>, vector<216x896xf32>
    %cst = arith.constant dense<0.000000e+00> : vector<8x896xf32>
    %84 = tpu.matmul %82, %83, %cst {dimension_numbers = #tpu.dot_dimension_numbers<[1], [0], [0], [1], [0, 0, 1, 1], [], []>} : vector<8x216xf32>, vector<216x896xf32>, vector<8x896xf32> -> vector<8x896xf32>
    %c0_35 = arith.constant 0 : index
    %c0_36 = arith.constant 0 : index
    %85 = vector.load %arg4[%c0_35, %c0_36] : memref<8x1xf32, #tpu.memory_space<vmem>>, vector<8x1xf32>
    %86 = vector.broadcast %85 : vector<8x1xf32> to vector<8x896xf32>
    %87 = arith.addf %84, %86 : vector<8x896xf32>
    %cst_37 = arith.constant 0.000000e+00 : f32
    %88 = vector.broadcast %cst_37 : f32 to vector<8x896xf32>
    %89 = arith.maximumf %87, %88 : vector<8x896xf32>
    %c0_38 = arith.constant 0 : index
    %c0_39 = arith.constant 0 : index
    %c0_40 = arith.constant 0 : index
    %c0_41 = arith.constant 0 : index
    %90 = vector.load %arg5[%c0_38, %c0_39, %c0_40, %c0_41] : memref<1x1x8x896xf32, #tpu.memory_space<vmem>>, vector<1x1x8x896xf32>
    %91 = vector.shape_cast %90 : vector<1x1x8x896xf32> to vector<8x896xf32>
    %92 = vector.shape_cast %89 : vector<8x896xf32> to vector<1x1x8x896xf32>
    tpu.vector_store %arg5[%c0_38, %c0_39, %c0_40, %c0_41], %92 {strides = array<i32>} : memref<1x1x8x896xf32, #tpu.memory_space<vmem>>, vector<1x1x8x896xf32>,
    return
  }
  func.func @transform_0(%arg0: i32, %arg1: i32) -> (i32, i32, i32, i32) {
    %c0_i32 = arith.constant 0 : i32
    %c0_i32_0 = arith.constant 0 : i32
    %c0_i32_1 = arith.constant 0 : i32
    return %arg0, %arg1, %c0_i32, %c0_i32_0 : i32, i32, i32, i32
  }
  func.func @transform_1(%arg0: i32, %arg1: i32) -> (i32, i32) {
    %c0_i32 = arith.constant 0 : i32
    %c0_i32_0 = arith.constant 0 : i32
    %c0_i32_1 = arith.constant 0 : i32
    return %c0_i32, %c0_i32_0 : i32, i32
  }
  func.func @transform_2(%arg0: i32, %arg1: i32) -> (i32, i32) {
    %c0_i32 = arith.constant 0 : i32
    %c0_i32_0 = arith.constant 0 : i32
    %c0_i32_1 = arith.constant 0 : i32
    return %c0_i32, %c0_i32_0 : i32, i32
  }
  func.func @transform_3(%arg0: i32, %arg1: i32) -> (i32, i32, i32, i32) {
    %c0_i32 = arith.constant 0 : i32
    %c0_i32_0 = arith.constant 0 : i32
    %c0_i32_1 = arith.constant 0 : i32
    return %arg0, %arg1, %c0_i32, %c0_i32_0 : i32, i32, i32, i32
  }
}

</mosaic_0001>

<llo_original>
// kernel: post_activation_3d_nobn.1
$region0: #{post_activation_3d_nobn.1}
  #allocation0 [shape = 'u32[]', space=smem, size = 0x4, offset = 0x4, fixed_abs, tag = 'smem constant byte address 0x4 - core index']
  #allocation1 [shape = 'u32[144,128]{1,0:T(1,128)}', space=vmem, size = 0x12000, scoped, tag = 'internal scratch']
  #allocation2 [shape = 'f32[216,896]{1,0:T(8,128)}', space=vmem, size = 0xbd000, scoped, tag = 'scratch operand']
  %s0 = inlined_call_operand.vmem [shape: f32[2,1,8,1152], index: 0, kind: input, shape index: {}]
  %s1 = inlined_call_operand.vmem [shape: f32[8,216], index: 1, kind: input, shape index: {}]
  %s2 = inlined_call_operand.vmem [shape: f32[8,1], index: 2, kind: input, shape index: {}]
  %s3 = inlined_call_operand.vmem [shape: f32[2,1,8,896], index: 3, kind: output, shape index: {}]
  %s4 = sld [smem:[#allocation0]]
  $region45: #{post_activation_3d_nobn.1} parent=0
    _
  %s6 = ssub.s32 1, %s4
  %s7 = scalar_select 0, %s6, %s4
  loop: start=0, step=1, limit=4
  $region2: #{post_activation_3d_nobn.1} parent=0 // loop_pre_header
    _
  $region3: #{post_activation_3d_nobn.1} parent=0 // loop_header
    %s9 = sphi 0, %s13
    %p10 = scmp.ge.s32.totalorder %s9, 4
    %s16 = sphi 0, %s28
    %s17 = sphi 0, %s24
    %s18 = sphi 0, %s16
    %s19 = sphi 0, %s17
    %s20 = sphi 0, %s18
    %s21 = sphi 0, %s19
    %s33 = sphi 0, %s35
    %s36 = sphi 0, %s33
    %s37 = sphi 0, %s36
    %s53 = sphi 0, %s37
    %s57 = sphi 0, %s57
    %s59 = sphi 0, %s57
    %s60 = sphi 0, %s59
    %s74 = sphi 0, %s60
    %s78 = sphi 0, %s78
    %s80 = sphi 0, %s78
    %s81 = sphi 0, %s80
    %s95 = sphi 0, %s81
    %s103 = sphi 0, %s105
    %s106 = sphi 0, %s103
    %s107 = sphi 0, %s106
    %s123 = sphi 0, %s107
  $region4: #{post_activation_3d_nobn.1} parent=0 // loop_header_branch
    %12 = sbr.rel (%p10) target = $region8
  $region5: #{post_activation_3d_nobn.1} parent=0 // loop_body
    %s14 = ssub.s32 %s9, 1
    %s15 = ssub.s32 %s9, 2
    %s22 = sadd.s32 1, %s17
    %p23 = scmp.ge.s32.totalorder %s22, 1
    %s24 = scalar_select %p23, 0, %s22
    %s25 = sadd.s32 1, %s16
    %s26 = scalar_select %p23, %s25, %s16
    %p27 = scmp.ge.s32.totalorder %s26, 2
    %s28 = scalar_select %p27, 0, %s26
    %s29 = ssub.s32 %s16, %s28
    %s30 = ssub.s32 %s17, %s24
    %s31 = sor.u32 %s29, %s30
    %p32 = scmp.eq.s32.totalorder %s31, 0
    %s34 = sadd.s32 %s33, 1
    %s35 = scalar_select %p32, %s33, %s34
    %p38 = pneg %p32
    %p39 = scmp.eq.s32.totalorder %s9, 1
    %p40 = por %p38, %p39
    %p41 = scmp.ne.s32.totalorder %s33, %s36
    %p42 = scmp.eq.s32.totalorder %s9, 0
    %p43 = por %p41, %p42
    %p44 = scmp.ne.s32.totalorder %s33, %s36
    %p45 = scmp.eq.s32.totalorder %s14, 1
    %p46 = por %p44, %p45
    %p47 = scmp.ne.s32.totalorder %s36, %s37
    %p48 = scmp.eq.s32.totalorder %s14, 0
    %p49 = por %p47, %p48
    %p50 = scmp.ne.s32.totalorder %s36, %s37
    %p51 = scmp.eq.s32.totalorder %s15, 1
    %p52 = por %p50, %p51
    %p54 = scmp.ne.s32.totalorder %s37, %s53
    %p55 = scmp.eq.s32.totalorder %s15, 0
    %p56 = por %p54, %p55
    %s58 = sadd.s32 %s57, 1
    %p61 = scmp.eq.s32.totalorder %s9, 1
    %p62 = scmp.ne.s32.totalorder %s57, %s59
    %p63 = scmp.eq.s32.totalorder %s9, 0
    %p64 = por %p62, %p63
    %p65 = scmp.ne.s32.totalorder %s57, %s59
    %p66 = scmp.eq.s32.totalorder %s14, 1
    %p67 = por %p65, %p66
    %p68 = scmp.ne.s32.totalorder %s59, %s60
    %p69 = scmp.eq.s32.totalorder %s14, 0
    %p70 = por %p68, %p69
    %p71 = scmp.ne.s32.totalorder %s59, %s60
    %p72 = scmp.eq.s32.totalorder %s15, 1
    %p73 = por %p71, %p72
    %p75 = scmp.ne.s32.totalorder %s60, %s74
    %p76 = scmp.eq.s32.totalorder %s15, 0
    %p77 = por %p75, %p76
    %s79 = sadd.s32 %s78, 1
    %p82 = scmp.eq.s32.totalorder %s9, 1
    %p83 = scmp.ne.s32.totalorder %s78, %s80
    %p84 = scmp.eq.s32.totalorder %s9, 0
    %p85 = por %p83, %p84
    %p86 = scmp.ne.s32.totalorder %s78, %s80
    %p87 = scmp.eq.s32.totalorder %s14, 1
    %p88 = por %p86, %p87
    %p89 = scmp.ne.s32.totalorder %s80, %s81
    %p90 = scmp.eq.s32.totalorder %s14, 0
    %p91 = por %p89, %p90
    %p92 = scmp.ne.s32.totalorder %s80, %s81
    %p93 = scmp.eq.s32.totalorder %s15, 1
    %p94 = por %p92, %p93
    %p96 = scmp.ne.s32.totalorder %s81, %s95
    %p97 = scmp.eq.s32.totalorder %s15, 0
    %p98 = por %p96, %p97
    %s99 = ssub.s32 %s16, %s28
    %s100 = ssub.s32 %s17, %s24
    %s101 = sor.u32 %s99, %s100
    %p102 = scmp.eq.s32.totalorder %s101, 0
    %s104 = sadd.s32 %s103, 1
    %s105 = scalar_select %p102, %s103, %s104
    %p108 = pneg %p102
    %p109 = scmp.eq.s32.totalorder %s9, 1
    %p110 = por %p108, %p109
    %p111 = scmp.ne.s32.totalorder %s103, %s106
    %p112 = scmp.eq.s32.totalorder %s9, 0
    %p113 = por %p111, %p112
    %p114 = scmp.ne.s32.totalorder %s103, %s106
    %p115 = scmp.eq.s32.totalorder %s14, 1
    %p116 = por %p114, %p115
    %p117 = scmp.ne.s32.totalorder %s106, %s107
    %p118 = scmp.eq.s32.totalorder %s14, 0
    %p119 = por %p117, %p118
    %p120 = scmp.ne.s32.totalorder %s106, %s107
    %p121 = scmp.eq.s32.totalorder %s15, 1
    %p122 = por %p120, %p121
    %p124 = scmp.ne.s32.totalorder %s107, %s123
    %p125 = scmp.eq.s32.totalorder %s15, 0
    %p126 = por %p124, %p125
    %p127 = scmp.le.s32.totalorder 1, %s9
    %p128 = scmp.lt.s32.totalorder %s9, 3
    %p129 = pnand %p127, %p128
    %p130 = pneg %p129
    // Predicated region
    $region9: #{post_activation_3d_nobn.1} parent=5 // pred_check
      _
    $region10: #{post_activation_3d_nobn.1} parent=5 // pred_check_branch
      %132 = sbr.rel (%p129) target = $region12
    $region11: #{post_activation_3d_nobn.1} parent=5 // pred_region
      %s133 = ssub.s32 %s9, 1
      // Predicated region
      $region13: #{post_activation_3d_nobn.1} parent=11 // pred_check
        %p134 = pneg %p70
      $region14: #{post_activation_3d_nobn.1} parent=11 // pred_check_branch
        %136 = sbr.rel (%p134) target = $region16
      $region15: #{post_activation_3d_nobn.1} parent=11 // pred_region
        _
      $region16: #{post_activation_3d_nobn.1} parent=11 // pred_fallthru
        _
      // Predicated region
      $region17: #{post_activation_3d_nobn.1} parent=11 // pred_check
        %p137 = pneg %p91
      $region18: #{post_activation_3d_nobn.1} parent=11 // pred_check_branch
        %139 = sbr.rel (%p137) target = $region20
      $region19: #{post_activation_3d_nobn.1} parent=11 // pred_region
        _
      $region20: #{post_activation_3d_nobn.1} parent=11 // pred_fallthru
        _
    $region12: #{post_activation_3d_nobn.1} parent=5 // pred_fallthru
      _
    %p140 = scmp.lt.s32.totalorder %s9, 2
    // Predicated region
    $region21: #{post_activation_3d_nobn.1} parent=5 // pred_check
      %p141 = pneg %p140
    $region22: #{post_activation_3d_nobn.1} parent=5 // pred_check_branch
      %143 = sbr.rel (%p141) target = $region24
    $region23: #{post_activation_3d_nobn.1} parent=5 // pred_region
      // Predicated region
      $region25: #{post_activation_3d_nobn.1} parent=23 // pred_check
        %p144 = pneg %p43
      $region26: #{post_activation_3d_nobn.1} parent=23 // pred_check_branch
        %146 = sbr.rel (%p144) target = $region28
      $region27: #{post_activation_3d_nobn.1} parent=23 // pred_region
        %p147 = scmp.lt.s32.totalorder %s16, 1
        %s148 = scalar_select %p147, %s16, 1
        %p149 = scmp.lt.s32.totalorder %s17, 0
        %s150 = scalar_select %p149, %s17, 0
        %s151 = smul.addr %s150, 9
        %s152 = smul.addr %s148, 9
        %s153 = sadd.s32 %s151, %s152
        %s154 = smul.addr %s153, 8
        %s155 = scalar_lea.vmem %s0, %s154
      $region28: #{post_activation_3d_nobn.1} parent=23 // pred_fallthru
        _
    $region24: #{post_activation_3d_nobn.1} parent=5 // pred_fallthru
      _
    %p156 = scmp.le.s32.totalorder 1, %s9
    %p157 = scmp.lt.s32.totalorder %s9, 3
    %p158 = pnand %p156, %p157
    %p159 = pneg %p158
    // Predicated region
    $region29: #{post_activation_3d_nobn.1} parent=5 // pred_check
      _
    $region30: #{post_activation_3d_nobn.1} parent=5 // pred_check_branch
      %161 = sbr.rel (%p158) target = $region32
    $region31: #{post_activation_3d_nobn.1} parent=5 // pred_region
      %s162 = ssub.s32 %s9, 1
      %p163 = scmp.lt.s32.totalorder %s18, 1
      %s164 = scalar_select %p163, %s18, 1
      %p165 = scmp.lt.s32.totalorder %s19, 0
      %s166 = scalar_select %p165, %s19, 0
      %s167 = smul.addr %s166, 9
      %s168 = smul.addr %s164, 9
      %s169 = sadd.s32 %s167, %s168
      %s170 = smul.addr %s169, 8
      %s171 = scalar_lea.vmem %s0, %s170
      %p172 = pneg %p49
      %p173 = pneg %p46
      %p174 = pneg %p70
      %p175 = pneg %p67
      %p176 = pneg %p91
      %p177 = pneg %p88
      %p178 = pneg %p119
      %p179 = pneg %p116
      %p180 = scmp.lt.s32.totalorder %s18, 1
      %s181 = scalar_select %p180, %s18, 1
      %p182 = scmp.lt.s32.totalorder %s19, 0
      %s183 = scalar_select %p182, %s19, 0
      %s184 = smul.addr %s183, 7
      %s185 = smul.addr %s181, 7
      %s186 = sadd.s32 %s184, %s185
      %s187 = smul.addr %s186, 8
      %s188 = scalar_lea.vmem %s3, %s187
      %p189 = scmp.lt.s32.totalorder %s18, 1
      %s190 = scalar_select %p189, %s18, 1
      %p191 = scmp.lt.s32.totalorder %s19, 0
      %s192 = scalar_select %p191, %s19, 0
      %s193 = smul.addr %s192, 9
      %s194 = smul.addr %s190, 9
      %s195 = sadd.s32 %s193, %s194
      %s196 = smul.addr %s195, 8
      %s197 = scalar_lea.vmem %s0, %s196
      %p198 = scmp.lt.s32.totalorder %s18, 1
      %s199 = scalar_select %p198, %s18, 1
      %p200 = scmp.lt.s32.totalorder %s19, 0
      %s201 = scalar_select %p200, %s19, 0
      %s202 = smul.addr %s201, 7
      %s203 = smul.addr %s199, 7
      %s204 = sadd.s32 %s202, %s203
      %s205 = smul.addr %s204, 8
      %s206 = scalar_lea.vmem %s3, %s205
      %v207 = vld [vmem:[%s197] sm:$0xff]
      %v208 = vld [vmem:[%s197 + $0x8] sm:$0xff]
      %v209 = vld [vmem:[%s197 + $0x10] sm:$0xff]
      %v210 = vld [vmem:[%s197 + $0x18] sm:$0xff]
      %v211 = vld [vmem:[%s197 + $0x20] sm:$0xff]
      %v212 = vld [vmem:[%s197 + $0x28] sm:$0xff]
      %v213 = vld [vmem:[%s197 + $0x30] sm:$0xff]
      %v214 = vld [vmem:[%s197 + $0x38] sm:$0xff]
      %v215 = vld [vmem:[%s197 + $0x40] sm:$0xff]
      %216 = vst [vmem:[#allocation2] sm:$0xff] %v207
      %217 = vst [vmem:[#allocation2 + $0x8] sm:$0xff] %v208
      %218 = vst [vmem:[#allocation2 + $0x10] sm:$0xff] %v209
      %219 = vst [vmem:[#allocation2 + $0x18] sm:$0xff] %v210
      %220 = vst [vmem:[#allocation2 + $0x20] sm:$0xff] %v211
      %221 = vst [vmem:[#allocation2 + $0x28] sm:$0xff] %v212
      %222 = vst [vmem:[#allocation2 + $0x30] sm:$0xff] %v213
      %223 = vrot.lane.b32.xlu0 %v207, 127
      %v224 = vpop.permute.xlu0 %223
      %225 = vrot.lane.b32.xlu0 %v208, 127
      %v226 = vpop.permute.xlu0 %225
      %227 = vrot.lane.b32.xlu0 %v209, 127
      %v228 = vpop.permute.xlu0 %227
      %229 = vrot.lane.b32.xlu0 %v210, 127
      %v230 = vpop.permute.xlu0 %229
      %231 = vrot.lane.b32.xlu0 %v211, 127
      %v232 = vpop.permute.xlu0 %231
      %233 = vrot.lane.b32.xlu0 %v212, 127
      %v234 = vpop.permute.xlu0 %233
      %235 = vrot.lane.b32.xlu0 %v213, 127
      %v236 = vpop.permute.xlu0 %235
      %237 = vrot.lane.b32.xlu0 %v214, 127
      %v238 = vpop.permute.xlu0 %237
      %v239 = vlaneseq
      %v240 = vand.u32 %v239, 127
      %vm241 = vcmp.lt.s32.totalorder %v240, 127
      %v242 = vsel %vm241, %v236, %v238
      %v243 = vsel %vm241, %v234, %v236
      %v244 = vsel %vm241, %v232, %v234
      %v245 = vsel %vm241, %v230, %v232
      %v246 = vsel %vm241, %v228, %v230
      %v247 = vsel %vm241, %v226, %v228
      %v248 = vsel %vm241, %v224, %v226
      %249 = vst [vmem:[#allocation2 + $0x38] sm:$0xff] %v248
      %250 = vst [vmem:[#allocation2 + $0x40] sm:$0xff] %v247
      %251 = vst [vmem:[#allocation2 + $0x48] sm:$0xff] %v246
      %252 = vst [vmem:[#allocation2 + $0x50] sm:$0xff] %v245
      %253 = vst [vmem:[#allocation2 + $0x58] sm:$0xff] %v244
      %254 = vst [vmem:[#allocation2 + $0x60] sm:$0xff] %v243
      %255 = vst [vmem:[#allocation2 + $0x68] sm:$0xff] %v242
      %256 = vrot.lane.b32.xlu0 %v207, 126
      %v257 = vpop.permute.xlu0 %256
      %258 = vrot.lane.b32.xlu0 %v208, 126
      %v259 = vpop.permute.xlu0 %258
      %260 = vrot.lane.b32.xlu0 %v209, 126
      %v261 = vpop.permute.xlu0 %260
      %262 = vrot.lane.b32.xlu0 %v210, 126
      %v263 = vpop.permute.xlu0 %262
      %264 = vrot.lane.b32.xlu0 %v211, 126
      %v265 = vpop.permute.xlu0 %264
      %266 = vrot.lane.b32.xlu0 %v212, 126
      %v267 = vpop.permute.xlu0 %266
      %268 = vrot.lane.b32.xlu0 %v213, 126
      %v269 = vpop.permute.xlu0 %268
      %270 = vrot.lane.b32.xlu0 %v214, 126
      %v271 = vpop.permute.xlu0 %270
      %vm272 = vcmp.lt.s32.totalorder %v240, 126
      %v273 = vsel %vm272, %v269, %v271
      %v274 = vsel %vm272, %v267, %v269
      %v275 = vsel %vm272, %v265, %v267
      %v276 = vsel %vm272, %v263, %v265
      %v277 = vsel %vm272, %v261, %v263
      %v278 = vsel %vm272, %v259, %v261
      %v279 = vsel %vm272, %v257, %v259
      %280 = vst [vmem:[#allocation2 + $0x70] sm:$0xff] %v279
      %281 = vst [vmem:[#allocation2 + $0x78] sm:$0xff] %v278
      %282 = vst [vmem:[#allocation2 + $0x80] sm:$0xff] %v277
      %283 = vst [vmem:[#allocation2 + $0x88] sm:$0xff] %v276
      %284 = vst [vmem:[#allocation2 + $0x90] sm:$0xff] %v275
      %285 = vst [vmem:[#allocation2 + $0x98] sm:$0xff] %v274
      %286 = vst [vmem:[#allocation2 + $0xa0] sm:$0xff] %v273
      %287 = vrot.lane.b32.xlu0 %v207, 118
      %v288 = vpop.permute.xlu0 %287
      %289 = vrot.lane.b32.xlu0 %v208, 118
      %v290 = vpop.permute.xlu0 %289
      %291 = vrot.lane.b32.xlu0 %v209, 118
      %v292 = vpop.permute.xlu0 %291
      %293 = vrot.lane.b32.xlu0 %v210, 118
      %v294 = vpop.permute.xlu0 %293
      %295 = vrot.lane.b32.xlu0 %v211, 118
      %v296 = vpop.permute.xlu0 %295
      %297 = vrot.lane.b32.xlu0 %v212, 118
      %v298 = vpop.permute.xlu0 %297
      %299 = vrot.lane.b32.xlu0 %v213, 118
      %v300 = vpop.permute.xlu0 %299
      %301 = vrot.lane.b32.xlu0 %v214, 118
      %v302 = vpop.permute.xlu0 %301
      %vm303 = vcmp.lt.s32.totalorder %v240, 118
      %v304 = vsel %vm303, %v300, %v302
      %v305 = vsel %vm303, %v298, %v300
      %v306 = vsel %vm303, %v296, %v298
      %v307 = vsel %vm303, %v294, %v296
      %v308 = vsel %vm303, %v292, %v294
      %v309 = vsel %vm303, %v290, %v292
      %v310 = vsel %vm303, %v288, %v290
      %311 = vst [vmem:[#allocation2 + $0xa8] sm:$0xff] %v310
      %312 = vst [vmem:[#allocation2 + $0xb0] sm:$0xff] %v309
      %313 = vst [vmem:[#allocation2 + $0xb8] sm:$0xff] %v308
      %314 = vst [vmem:[#allocation2 + $0xc0] sm:$0xff] %v307
      %315 = vst [vmem:[#allocation2 + $0xc8] sm:$0xff] %v306
      %316 = vst [vmem:[#allocation2 + $0xd0] sm:$0xff] %v305
      %317 = vst [vmem:[#allocation2 + $0xd8] sm:$0xff] %v304
      %318 = vrot.lane.b32.xlu0 %v207, 117
      %v319 = vpop.permute.xlu0 %318
      %320 = vrot.lane.b32.xlu0 %v208, 117
      %v321 = vpop.permute.xlu0 %320
      %322 = vrot.lane.b32.xlu0 %v209, 117
      %v323 = vpop.permute.xlu0 %322
      %324 = vrot.lane.b32.xlu0 %v210, 117
      %v325 = vpop.permute.xlu0 %324
      %326 = vrot.lane.b32.xlu0 %v211, 117
      %v327 = vpop.permute.xlu0 %326
      %328 = vrot.lane.b32.xlu0 %v212, 117
      %v329 = vpop.permute.xlu0 %328
      %330 = vrot.lane.b32.xlu0 %v213, 117
      %v331 = vpop.permute.xlu0 %330
      %332 = vrot.lane.b32.xlu0 %v214, 117
      %v333 = vpop.permute.xlu0 %332
      %vm334 = vcmp.lt.s32.totalorder %v240, 117
      %v335 = vsel %vm334, %v331, %v333
      %v336 = vsel %vm334, %v329, %v331
      %v337 = vsel %vm334, %v327, %v329
      %v338 = vsel %vm334, %v325, %v327
      %v339 = vsel %vm334, %v323, %v325
      %v340 = vsel %vm334, %v321, %v323
      %v341 = vsel %vm334, %v319, %v321
      %342 = vst [vmem:[#allocation2 + $0xe0] sm:$0xff] %v341
      %343 = vst [vmem:[#allocation2 + $0xe8] sm:$0xff] %v340
      %344 = vst [vmem:[#allocation2 + $0xf0] sm:$0xff] %v339
      %345 = vst [vmem:[#allocation2 + $0xf8] sm:$0xff] %v338
      %346 = vst [vmem:[#allocation2 + $0x100] sm:$0xff] %v337
      %347 = vst [vmem:[#allocation2 + $0x108] sm:$0xff] %v336
      %348 = vst [vmem:[#allocation2 + $0x110] sm:$0xff] %v335
      %349 = vrot.lane.b32.xlu0 %v207, 116
      %v350 = vpop.permute.xlu0 %349
      %351 = vrot.lane.b32.xlu0 %v208, 116
      %v352 = vpop.permute.xlu0 %351
      %353 = vrot.lane.b32.xlu0 %v209, 116
      %v354 = vpop.permute.xlu0 %353
      %355 = vrot.lane.b32.xlu0 %v210, 116
      %v356 = vpop.permute.xlu0 %355
      %357 = vrot.lane.b32.xlu0 %v211, 116
      %v358 = vpop.permute.xlu0 %357
      %359 = vrot.lane.b32.xlu0 %v212, 116
      %v360 = vpop.permute.xlu0 %359
      %361 = vrot.lane.b32.xlu0 %v213, 116
      %v362 = vpop.permute.xlu0 %361
      %363 = vrot.lane.b32.xlu0 %v214, 116
      %v364 = vpop.permute.xlu0 %363
      %vm365 = vcmp.lt.s32.totalorder %v240, 116
      %v366 = vsel %vm365, %v362, %v364
      %v367 = vsel %vm365, %v360, %v362
      %v368 = vsel %vm365, %v358, %v360
      %v369 = vsel %vm365, %v356, %v358
      %v370 = vsel %vm365, %v354, %v356
      %v371 = vsel %vm365, %v352, %v354
      %v372 = vsel %vm365, %v350, %v352
      %373 = vst [vmem:[#allocation2 + $0x118] sm:$0xff] %v372
      %374 = vst [vmem:[#allocation2 + $0x120] sm:$0xff] %v371
      %375 = vst [vmem:[#allocation2 + $0x128] sm:$0xff] %v370
      %376 = vst [vmem:[#allocation2 + $0x130] sm:$0xff] %v369
      %377 = vst [vmem:[#allocation2 + $0x138] sm:$0xff] %v368
      %378 = vst [vmem:[#allocation2 + $0x140] sm:$0xff] %v367
      %379 = vst [vmem:[#allocation2 + $0x148] sm:$0xff] %v366
      %380 = vrot.lane.b32.xlu0 %v207, 108
      %v381 = vpop.permute.xlu0 %380
      %382 = vrot.lane.b32.xlu0 %v208, 108
      %v383 = vpop.permute.xlu0 %382
      %384 = vrot.lane.b32.xlu0 %v209, 108
      %v385 = vpop.permute.xlu0 %384
      %386 = vrot.lane.b32.xlu0 %v210, 108
      %v387 = vpop.permute.xlu0 %386
      %388 = vrot.lane.b32.xlu0 %v211, 108
      %v389 = vpop.permute.xlu0 %388
      %390 = vrot.lane.b32.xlu0 %v212, 108
      %v391 = vpop.permute.xlu0 %390
      %392 = vrot.lane.b32.xlu0 %v213, 108
      %v393 = vpop.permute.xlu0 %392
      %394 = vrot.lane.b32.xlu0 %v214, 108
      %v395 = vpop.permute.xlu0 %394
      %vm396 = vcmp.lt.s32.totalorder %v240, 108
      %v397 = vsel %vm396, %v393, %v395
      %v398 = vsel %vm396, %v391, %v393
      %v399 = vsel %vm396, %v389, %v391
      %v400 = vsel %vm396, %v387, %v389
      %v401 = vsel %vm396, %v385, %v387
      %v402 = vsel %vm396, %v383, %v385
      %v403 = vsel %vm396, %v381, %v383
      %404 = vst [vmem:[#allocation2 + $0x150] sm:$0xff] %v403
      %405 = vst [vmem:[#allocation2 + $0x158] sm:$0xff] %v402
      %406 = vst [vmem:[#allocation2 + $0x160] sm:$0xff] %v401
      %407 = vst [vmem:[#allocation2 + $0x168] sm:$0xff] %v400
      %408 = vst [vmem:[#allocation2 + $0x170] sm:$0xff] %v399
      %409 = vst [vmem:[#allocation2 + $0x178] sm:$0xff] %v398
      %410 = vst [vmem:[#allocation2 + $0x180] sm:$0xff] %v397
      %411 = vrot.lane.b32.xlu0 %v207, 107
      %v412 = vpop.permute.xlu0 %411
      %413 = vrot.lane.b32.xlu0 %v208, 107
      %v414 = vpop.permute.xlu0 %413
      %415 = vrot.lane.b32.xlu0 %v209, 107
      %v416 = vpop.permute.xlu0 %415
      %417 = vrot.lane.b32.xlu0 %v210, 107
      %v418 = vpop.permute.xlu0 %417
      %419 = vrot.lane.b32.xlu0 %v211, 107
      %v420 = vpop.permute.xlu0 %419
      %421 = vrot.lane.b32.xlu0 %v212, 107
      %v422 = vpop.permute.xlu0 %421
      %423 = vrot.lane.b32.xlu0 %v213, 107
      %v424 = vpop.permute.xlu0 %423
      %425 = vrot.lane.b32.xlu0 %v214, 107
      %v426 = vpop.permute.xlu0 %425
      %vm427 = vcmp.lt.s32.totalorder %v240, 107
      %v428 = vsel %vm427, %v424, %v426
      %v429 = vsel %vm427, %v422, %v424
      %v430 = vsel %vm427, %v420, %v422
      %v431 = vsel %vm427, %v418, %v420
      %v432 = vsel %vm427, %v416, %v418
      %v433 = vsel %vm427, %v414, %v416
      %v434 = vsel %vm427, %v412, %v414
      %435 = vst [vmem:[#allocation2 + $0x188] sm:$0xff] %v434
      %436 = vst [vmem:[#allocation2 + $0x190] sm:$0xff] %v433
      %437 = vst [vmem:[#allocation2 + $0x198] sm:$0xff] %v432
      %438 = vst [vmem:[#allocation2 + $0x1a0] sm:$0xff] %v431
      %439 = vst [vmem:[#allocation2 + $0x1a8] sm:$0xff] %v430
      %440 = vst [vmem:[#allocation2 + $0x1b0] sm:$0xff] %v429
      %441 = vst [vmem:[#allocation2 + $0x1b8] sm:$0xff] %v428
      %442 = vrot.lane.b32.xlu0 %v207, 106
      %v443 = vpop.permute.xlu0 %442
      %444 = vrot.lane.b32.xlu0 %v208, 106
      %v445 = vpop.permute.xlu0 %444
      %446 = vrot.lane.b32.xlu0 %v209, 106
      %v447 = vpop.permute.xlu0 %446
      %448 = vrot.lane.b32.xlu0 %v210, 106
      %v449 = vpop.permute.xlu0 %448
      %450 = vrot.lane.b32.xlu0 %v211, 106
      %v451 = vpop.permute.xlu0 %450
      %452 = vrot.lane.b32.xlu0 %v212, 106
      %v453 = vpop.permute.xlu0 %452
      %454 = vrot.lane.b32.xlu0 %v213, 106
      %v455 = vpop.permute.xlu0 %454
      %456 = vrot.lane.b32.xlu0 %v214, 106
      %v457 = vpop.permute.xlu0 %456
      %vm458 = vcmp.lt.s32.totalorder %v240, 106
      %v459 = vsel %vm458, %v455, %v457
      %v460 = vsel %vm458, %v453, %v455
      %v461 = vsel %vm458, %v451, %v453
      %v462 = vsel %vm458, %v449, %v451
      %v463 = vsel %vm458, %v447, %v449
      %v464 = vsel %vm458, %v445, %v447
      %v465 = vsel %vm458, %v443, %v445
      %466 = vst [vmem:[#allocation2 + $0x1c0] sm:$0xff] %v465
      %467 = vst [vmem:[#allocation2 + $0x1c8] sm:$0xff] %v464
      %468 = vst [vmem:[#allocation2 + $0x1d0] sm:$0xff] %v463
      %469 = vst [vmem:[#allocation2 + $0x1d8] sm:$0xff] %v462
      %470 = vst [vmem:[#allocation2 + $0x1e0] sm:$0xff] %v461
      %471 = vst [vmem:[#allocation2 + $0x1e8] sm:$0xff] %v460
      %472 = vst [vmem:[#allocation2 + $0x1f0] sm:$0xff] %v459
      %473 = vrot.lane.b32.xlu0 %v207, 28
      %v474 = vpop.permute.xlu0 %473
      %475 = vrot.lane.b32.xlu0 %v208, 28
      %v476 = vpop.permute.xlu0 %475
      %477 = vrot.lane.b32.xlu0 %v209, 28
      %v478 = vpop.permute.xlu0 %477
      %479 = vrot.lane.b32.xlu0 %v210, 28
      %v480 = vpop.permute.xlu0 %479
      %481 = vrot.lane.b32.xlu0 %v211, 28
      %v482 = vpop.permute.xlu0 %481
      %483 = vrot.lane.b32.xlu0 %v212, 28
      %v484 = vpop.permute.xlu0 %483
      %485 = vrot.lane.b32.xlu0 %v213, 28
      %v486 = vpop.permute.xlu0 %485
      %487 = vrot.lane.b32.xlu0 %v214, 28
      %v488 = vpop.permute.xlu0 %487
      %vm489 = vcmp.lt.s32.totalorder %v240, 28
      %v490 = vsel %vm489, %v486, %v488
      %v491 = vsel %vm489, %v484, %v486
      %v492 = vsel %vm489, %v482, %v484
      %v493 = vsel %vm489, %v480, %v482
      %v494 = vsel %vm489, %v478, %v480
      %v495 = vsel %vm489, %v476, %v478
      %v496 = vsel %vm489, %v474, %v476
      %497 = vst [vmem:[#allocation2 + $0x1f8] sm:$0xff] %v496
      %498 = vst [vmem:[#allocation2 + $0x200] sm:$0xff] %v495
      %499 = vst [vmem:[#allocation2 + $0x208] sm:$0xff] %v494
      %500 = vst [vmem:[#allocation2 + $0x210] sm:$0xff] %v493
      %501 = vst [vmem:[#allocation2 + $0x218] sm:$0xff] %v492
      %502 = vst [vmem:[#allocation2 + $0x220] sm:$0xff] %v491
      %503 = vst [vmem:[#allocation2 + $0x228] sm:$0xff] %v490
      %504 = vrot.lane.b32.xlu0 %v207, 27
      %v505 = vpop.permute.xlu0 %504
      %506 = vrot.lane.b32.xlu0 %v208, 27
      %v507 = vpop.permute.xlu0 %506
      %508 = vrot.lane.b32.xlu0 %v209, 27
      %v509 = vpop.permute.xlu0 %508
      %510 = vrot.lane.b32.xlu0 %v210, 27
      %v511 = vpop.permute.xlu0 %510
      %512 = vrot.lane.b32.xlu0 %v211, 27
      %v513 = vpop.permute.xlu0 %512
      %514 = vrot.lane.b32.xlu0 %v212, 27
      %v515 = vpop.permute.xlu0 %514
      %516 = vrot.lane.b32.xlu0 %v213, 27
      %v517 = vpop.permute.xlu0 %516
      %518 = vrot.lane.b32.xlu0 %v214, 27
      %v519 = vpop.permute.xlu0 %518
      %vm520 = vcmp.lt.s32.totalorder %v240, 27
      %v521 = vsel %vm520, %v517, %v519
      %v522 = vsel %vm520, %v515, %v517
      %v523 = vsel %vm520, %v513, %v515
      %v524 = vsel %vm520, %v511, %v513
      %v525 = vsel %vm520, %v509, %v511
      %v526 = vsel %vm520, %v507, %v509
      %v527 = vsel %vm520, %v505, %v507
      %528 = vst [vmem:[#allocation2 + $0x230] sm:$0xff] %v527
      %529 = vst [vmem:[#allocation2 + $0x238] sm:$0xff] %v526
      %530 = vst [vmem:[#allocation2 + $0x240] sm:$0xff] %v525
      %531 = vst [vmem:[#allocation2 + $0x248] sm:$0xff] %v524
      %532 = vst [vmem:[#allocation2 + $0x250] sm:$0xff] %v523
      %533 = vst [vmem:[#allocation2 + $0x258] sm:$0xff] %v522
      %534 = vst [vmem:[#allocation2 + $0x260] sm:$0xff] %v521
      %535 = vrot.lane.b32.xlu0 %v207, 26
      %v536 = vpop.permute.xlu0 %535
      %537 = vrot.lane.b32.xlu0 %v208, 26
      %v538 = vpop.permute.xlu0 %537
      %539 = vrot.lane.b32.xlu0 %v209, 26
      %v540 = vpop.permute.xlu0 %539
      %541 = vrot.lane.b32.xlu0 %v210, 26
      %v542 = vpop.permute.xlu0 %541
      %543 = vrot.lane.b32.xlu0 %v211, 26
      %v544 = vpop.permute.xlu0 %543
      %545 = vrot.lane.b32.xlu0 %v212, 26
      %v546 = vpop.permute.xlu0 %545
      %547 = vrot.lane.b32.xlu0 %v213, 26
      %v548 = vpop.permute.xlu0 %547
      %549 = vrot.lane.b32.xlu0 %v214, 26
      %v550 = vpop.permute.xlu0 %549
      %vm551 = vcmp.lt.s32.totalorder %v240, 26
      %v552 = vsel %vm551, %v548, %v550
      %v553 = vsel %vm551, %v546, %v548
      %v554 = vsel %vm551, %v544, %v546
      %v555 = vsel %vm551, %v542, %v544
      %v556 = vsel %vm551, %v540, %v542
      %v557 = vsel %vm551, %v538, %v540
      %v558 = vsel %vm551, %v536, %v538
      %559 = vst [vmem:[#allocation2 + $0x268] sm:$0xff] %v558
      %560 = vst [vmem:[#allocation2 + $0x270] sm:$0xff] %v557
      %561 = vst [vmem:[#allocation2 + $0x278] sm:$0xff] %v556
      %562 = vst [vmem:[#allocation2 + $0x280] sm:$0xff] %v555
      %563 = vst [vmem:[#allocation2 + $0x288] sm:$0xff] %v554
      %564 = vst [vmem:[#allocation2 + $0x290] sm:$0xff] %v553
      %565 = vst [vmem:[#allocation2 + $0x298] sm:$0xff] %v552
      %566 = vrot.lane.b32.xlu0 %v207, 18
      %v567 = vpop.permute.xlu0 %566
      %568 = vrot.lane.b32.xlu0 %v208, 18
      %v569 = vpop.permute.xlu0 %568
      %570 = vrot.lane.b32.xlu0 %v209, 18
      %v571 = vpop.permute.xlu0 %570
      %572 = vrot.lane.b32.xlu0 %v210, 18
      %v573 = vpop.permute.xlu0 %572
      %574 = vrot.lane.b32.xlu0 %v211, 18
      %v575 = vpop.permute.xlu0 %574
      %576 = vrot.lane.b32.xlu0 %v212, 18
      %v577 = vpop.permute.xlu0 %576
      %578 = vrot.lane.b32.xlu0 %v213, 18
      %v579 = vpop.permute.xlu0 %578
      %580 = vrot.lane.b32.xlu0 %v214, 18
      %v581 = vpop.permute.xlu0 %580
      %vm582 = vcmp.lt.s32.totalorder %v240, 18
      %v583 = vsel %vm582, %v579, %v581
      %v584 = vsel %vm582, %v577, %v579
      %v585 = vsel %vm582, %v575, %v577
      %v586 = vsel %vm582, %v573, %v575
      %v587 = vsel %vm582, %v571, %v573
      %v588 = vsel %vm582, %v569, %v571
      %v589 = vsel %vm582, %v567, %v569
      %590 = vst [vmem:[#allocation2 + $0x2a0] sm:$0xff] %v589
      %591 = vst [vmem:[#allocation2 + $0x2a8] sm:$0xff] %v588
      %592 = vst [vmem:[#allocation2 + $0x2b0] sm:$0xff] %v587
      %593 = vst [vmem:[#allocation2 + $0x2b8] sm:$0xff] %v586
      %594 = vst [vmem:[#allocation2 + $0x2c0] sm:$0xff] %v585
      %595 = vst [vmem:[#allocation2 + $0x2c8] sm:$0xff] %v584
      %596 = vst [vmem:[#allocation2 + $0x2d0] sm:$0xff] %v583
      %597 = vrot.lane.b32.xlu0 %v207, 17
      %v598 = vpop.permute.xlu0 %597
      %599 = vrot.lane.b32.xlu0 %v208, 17
      %v600 = vpop.permute.xlu0 %599
      %601 = vrot.lane.b32.xlu0 %v209, 17
      %v602 = vpop.permute.xlu0 %601
      %603 = vrot.lane.b32.xlu0 %v210, 17
      %v604 = vpop.permute.xlu0 %603
      %605 = vrot.lane.b32.xlu0 %v211, 17
      %v606 = vpop.permute.xlu0 %605
      %607 = vrot.lane.b32.xlu0 %v212, 17
      %v608 = vpop.permute.xlu0 %607
      %609 = vrot.lane.b32.xlu0 %v213, 17
      %v610 = vpop.permute.xlu0 %609
      %611 = vrot.lane.b32.xlu0 %v214, 17
      %v612 = vpop.permute.xlu0 %611
      %vm613 = vcmp.lt.s32.totalorder %v240, 17
      %v614 = vsel %vm613, %v610, %v612
      %v615 = vsel %vm613, %v608, %v610
      %v616 = vsel %vm613, %v606, %v608
      %v617 = vsel %vm613, %v604, %v606
      %v618 = vsel %vm613, %v602, %v604
      %v619 = vsel %vm613, %v600, %v602
      %v620 = vsel %vm613, %v598, %v600
      %621 = vst [vmem:[#allocation2 + $0x2d8] sm:$0xff] %v620
      %622 = vst [vmem:[#allocation2 + $0x2e0] sm:$0xff] %v619
      %623 = vst [vmem:[#allocation2 + $0x2e8] sm:$0xff] %v618
      %624 = vst [vmem:[#allocation2 + $0x2f0] sm:$0xff] %v617
      %625 = vst [vmem:[#allocation2 + $0x2f8] sm:$0xff] %v616
      %626 = vst [vmem:[#allocation2 + $0x300] sm:$0xff] %v615
      %627 = vst [vmem:[#allocation2 + $0x308] sm:$0xff] %v614
      %628 = vrot.lane.b32.xlu0 %v207, 16
      %v629 = vpop.permute.xlu0 %628
      %630 = vrot.lane.b32.xlu0 %v208, 16
      %v631 = vpop.permute.xlu0 %630
      %632 = vrot.lane.b32.xlu0 %v209, 16
      %v633 = vpop.permute.xlu0 %632
      %634 = vrot.lane.b32.xlu0 %v210, 16
      %v635 = vpop.permute.xlu0 %634
      %636 = vrot.lane.b32.xlu0 %v211, 16
      %v637 = vpop.permute.xlu0 %636
      %638 = vrot.lane.b32.xlu0 %v212, 16
      %v639 = vpop.permute.xlu0 %638
      %640 = vrot.lane.b32.xlu0 %v213, 16
      %v641 = vpop.permute.xlu0 %640
      %642 = vrot.lane.b32.xlu0 %v214, 16
      %v643 = vpop.permute.xlu0 %642
      %vm644 = vcmp.lt.s32.totalorder %v240, 16
      %v645 = vsel %vm644, %v641, %v643
      %v646 = vsel %vm644, %v639, %v641
      %v647 = vsel %vm644, %v637, %v639
      %v648 = vsel %vm644, %v635, %v637
      %v649 = vsel %vm644, %v633, %v635
      %v650 = vsel %vm644, %v631, %v633
      %v651 = vsel %vm644, %v629, %v631
      %652 = vst [vmem:[#allocation2 + $0x310] sm:$0xff] %v651
      %653 = vst [vmem:[#allocation2 + $0x318] sm:$0xff] %v650
      %654 = vst [vmem:[#allocation2 + $0x320] sm:$0xff] %v649
      %655 = vst [vmem:[#allocation2 + $0x328] sm:$0xff] %v648
      %656 = vst [vmem:[#allocation2 + $0x330] sm:$0xff] %v647
      %657 = vst [vmem:[#allocation2 + $0x338] sm:$0xff] %v646
      %658 = vst [vmem:[#allocation2 + $0x340] sm:$0xff] %v645
      %659 = vrot.lane.b32.xlu0 %v207, 8
      %v660 = vpop.permute.xlu0 %659
      %661 = vrot.lane.b32.xlu0 %v208, 8
      %v662 = vpop.permute.xlu0 %661
      %663 = vrot.lane.b32.xlu0 %v209, 8
      %v664 = vpop.permute.xlu0 %663
      %665 = vrot.lane.b32.xlu0 %v210, 8
      %v666 = vpop.permute.xlu0 %665
      %667 = vrot.lane.b32.xlu0 %v211, 8
      %v668 = vpop.permute.xlu0 %667
      %669 = vrot.lane.b32.xlu0 %v212, 8
      %v670 = vpop.permute.xlu0 %669
      %671 = vrot.lane.b32.xlu0 %v213, 8
      %v672 = vpop.permute.xlu0 %671
      %673 = vrot.lane.b32.xlu0 %v214, 8
      %v674 = vpop.permute.xlu0 %673
      %vm675 = vcmp.lt.s32.totalorder %v240, 8
      %v676 = vsel %vm675, %v672, %v674
      %v677 = vsel %vm675, %v670, %v672
      %v678 = vsel %vm675, %v668, %v670
      %v679 = vsel %vm675, %v666, %v668
      %v680 = vsel %vm675, %v664, %v666
      %v681 = vsel %vm675, %v662, %v664
      %v682 = vsel %vm675, %v660, %v662
      %683 = vst [vmem:[#allocation2 + $0x348] sm:$0xff] %v682
      %684 = vst [vmem:[#allocation2 + $0x350] sm:$0xff] %v681
      %685 = vst [vmem:[#allocation2 + $0x358] sm:$0xff] %v680
      %686 = vst [vmem:[#allocation2 + $0x360] sm:$0xff] %v679
      %687 = vst [vmem:[#allocation2 + $0x368] sm:$0xff] %v678
      %688 = vst [vmem:[#allocation2 + $0x370] sm:$0xff] %v677
      %689 = vst [vmem:[#allocation2 + $0x378] sm:$0xff] %v676
      %690 = vrot.lane.b32.xlu0 %v207, 7
      %v691 = vpop.permute.xlu0 %690
      %692 = vrot.lane.b32.xlu0 %v208, 7
      %v693 = vpop.permute.xlu0 %692
      %694 = vrot.lane.b32.xlu0 %v209, 7
      %v695 = vpop.permute.xlu0 %694
      %696 = vrot.lane.b32.xlu0 %v210, 7
      %v697 = vpop.permute.xlu0 %696
      %698 = vrot.lane.b32.xlu0 %v211, 7
      %v699 = vpop.permute.xlu0 %698
      %700 = vrot.lane.b32.xlu0 %v212, 7
      %v701 = vpop.permute.xlu0 %700
      %702 = vrot.lane.b32.xlu0 %v213, 7
      %v703 = vpop.permute.xlu0 %702
      %704 = vrot.lane.b32.xlu0 %v214, 7
      %v705 = vpop.permute.xlu0 %704
      %vm706 = vcmp.lt.s32.totalorder %v240, 7
      %v707 = vsel %vm706, %v703, %v705
      %v708 = vsel %vm706, %v701, %v703
      %v709 = vsel %vm706, %v699, %v701
      %v710 = vsel %vm706, %v697, %v699
      %v711 = vsel %vm706, %v695, %v697
      %v712 = vsel %vm706, %v693, %v695
      %v713 = vsel %vm706, %v691, %v693
      %714 = vst [vmem:[#allocation2 + $0x380] sm:$0xff] %v713
      %715 = vst [vmem:[#allocation2 + $0x388] sm:$0xff] %v712
      %716 = vst [vmem:[#allocation2 + $0x390] sm:$0xff] %v711
      %717 = vst [vmem:[#allocation2 + $0x398] sm:$0xff] %v710
      %718 = vst [vmem:[#allocation2 + $0x3a0] sm:$0xff] %v709
      %719 = vst [vmem:[#allocation2 + $0x3a8] sm:$0xff] %v708
      %720 = vst [vmem:[#allocation2 + $0x3b0] sm:$0xff] %v707
      %721 = vrot.lane.b32.xlu0 %v207, 6
      %v722 = vpop.permute.xlu0 %721
      %723 = vrot.lane.b32.xlu0 %v208, 6
      %v724 = vpop.permute.xlu0 %723
      %725 = vrot.lane.b32.xlu0 %v209, 6
      %v726 = vpop.permute.xlu0 %725
      %727 = vrot.lane.b32.xlu0 %v210, 6
      %v728 = vpop.permute.xlu0 %727
      %729 = vrot.lane.b32.xlu0 %v211, 6
      %v730 = vpop.permute.xlu0 %729
      %731 = vrot.lane.b32.xlu0 %v212, 6
      %v732 = vpop.permute.xlu0 %731
      %733 = vrot.lane.b32.xlu0 %v213, 6
      %v734 = vpop.permute.xlu0 %733
      %735 = vrot.lane.b32.xlu0 %v214, 6
      %v736 = vpop.permute.xlu0 %735
      %vm737 = vcmp.lt.s32.totalorder %v240, 6
      %v738 = vsel %vm737, %v734, %v736
      %v739 = vsel %vm737, %v732, %v734
      %v740 = vsel %vm737, %v730, %v732
      %v741 = vsel %vm737, %v728, %v730
      %v742 = vsel %vm737, %v726, %v728
      %v743 = vsel %vm737, %v724, %v726
      %v744 = vsel %vm737, %v722, %v724
      %745 = vst [vmem:[#allocation2 + $0x3b8] sm:$0xff] %v744
      %746 = vst [vmem:[#allocation2 + $0x3c0] sm:$0xff] %v743
      %747 = vst [vmem:[#allocation2 + $0x3c8] sm:$0xff] %v742
      %748 = vst [vmem:[#allocation2 + $0x3d0] sm:$0xff] %v741
      %749 = vst [vmem:[#allocation2 + $0x3d8] sm:$0xff] %v740
      %750 = vst [vmem:[#allocation2 + $0x3e0] sm:$0xff] %v739
      %751 = vst [vmem:[#allocation2 + $0x3e8] sm:$0xff] %v738
      %752 = vrot.lane.b32.xlu0 %v208, 56
      %v753 = vpop.permute.xlu0 %752
      %754 = vrot.lane.b32.xlu0 %v209, 56
      %v755 = vpop.permute.xlu0 %754
      %756 = vrot.lane.b32.xlu0 %v210, 56
      %v757 = vpop.permute.xlu0 %756
      %758 = vrot.lane.b32.xlu0 %v211, 56
      %v759 = vpop.permute.xlu0 %758
      %760 = vrot.lane.b32.xlu0 %v212, 56
      %v761 = vpop.permute.xlu0 %760
      %762 = vrot.lane.b32.xlu0 %v213, 56
      %v763 = vpop.permute.xlu0 %762
      %764 = vrot.lane.b32.xlu0 %v214, 56
      %v765 = vpop.permute.xlu0 %764
      %766 = vrot.lane.b32.xlu0 %v215, 56
      %v767 = vpop.permute.xlu0 %766
      %vm768 = vcmp.lt.s32.totalorder %v240, 56
      %v769 = vsel %vm768, %v765, %v767
      %v770 = vsel %vm768, %v763, %v765
      %v771 = vsel %vm768, %v761, %v763
      %v772 = vsel %vm768, %v759, %v761
      %v773 = vsel %vm768, %v757, %v759
      %v774 = vsel %vm768, %v755, %v757
      %v775 = vsel %vm768, %v753, %v755
      %776 = vst [vmem:[#allocation2 + $0x3f0] sm:$0xff] %v775
      %777 = vst [vmem:[#allocation2 + $0x3f8] sm:$0xff] %v774
      %778 = vst [vmem:[#allocation2 + $0x400] sm:$0xff] %v773
      %779 = vst [vmem:[#allocation2 + $0x408] sm:$0xff] %v772
      %780 = vst [vmem:[#allocation2 + $0x410] sm:$0xff] %v771
      %781 = vst [vmem:[#allocation2 + $0x418] sm:$0xff] %v770
      %782 = vst [vmem:[#allocation2 + $0x420] sm:$0xff] %v769
      %783 = vrot.lane.b32.xlu0 %v208, 55
      %v784 = vpop.permute.xlu0 %783
      %785 = vrot.lane.b32.xlu0 %v209, 55
      %v786 = vpop.permute.xlu0 %785
      %787 = vrot.lane.b32.xlu0 %v210, 55
      %v788 = vpop.permute.xlu0 %787
      %789 = vrot.lane.b32.xlu0 %v211, 55
      %v790 = vpop.permute.xlu0 %789
      %791 = vrot.lane.b32.xlu0 %v212, 55
      %v792 = vpop.permute.xlu0 %791
      %793 = vrot.lane.b32.xlu0 %v213, 55
      %v794 = vpop.permute.xlu0 %793
      %795 = vrot.lane.b32.xlu0 %v214, 55
      %v796 = vpop.permute.xlu0 %795
      %797 = vrot.lane.b32.xlu0 %v215, 55
      %v798 = vpop.permute.xlu0 %797
      %vm799 = vcmp.lt.s32.totalorder %v240, 55
      %v800 = vsel %vm799, %v796, %v798
      %v801 = vsel %vm799, %v794, %v796
      %v802 = vsel %vm799, %v792, %v794
      %v803 = vsel %vm799, %v790, %v792
      %v804 = vsel %vm799, %v788, %v790
      %v805 = vsel %vm799, %v786, %v788
      %v806 = vsel %vm799, %v784, %v786
      %807 = vst [vmem:[#allocation2 + $0x428] sm:$0xff] %v806
      %808 = vst [vmem:[#allocation2 + $0x430] sm:$0xff] %v805
      %809 = vst [vmem:[#allocation2 + $0x438] sm:$0xff] %v804
      %810 = vst [vmem:[#allocation2 + $0x440] sm:$0xff] %v803
      %811 = vst [vmem:[#allocation2 + $0x448] sm:$0xff] %v802
      %812 = vst [vmem:[#allocation2 + $0x450] sm:$0xff] %v801
      %813 = vst [vmem:[#allocation2 + $0x458] sm:$0xff] %v800
      %814 = vrot.lane.b32.xlu0 %v208, 54
      %v815 = vpop.permute.xlu0 %814
      %816 = vrot.lane.b32.xlu0 %v209, 54
      %v817 = vpop.permute.xlu0 %816
      %818 = vrot.lane.b32.xlu0 %v210, 54
      %v819 = vpop.permute.xlu0 %818
      %820 = vrot.lane.b32.xlu0 %v211, 54
      %v821 = vpop.permute.xlu0 %820
      %822 = vrot.lane.b32.xlu0 %v212, 54
      %v823 = vpop.permute.xlu0 %822
      %824 = vrot.lane.b32.xlu0 %v213, 54
      %v825 = vpop.permute.xlu0 %824
      %826 = vrot.lane.b32.xlu0 %v214, 54
      %v827 = vpop.permute.xlu0 %826
      %828 = vrot.lane.b32.xlu0 %v215, 54
      %v829 = vpop.permute.xlu0 %828
      %vm830 = vcmp.lt.s32.totalorder %v240, 54
      %v831 = vsel %vm830, %v827, %v829
      %v832 = vsel %vm830, %v825, %v827
      %v833 = vsel %vm830, %v823, %v825
      %v834 = vsel %vm830, %v821, %v823
      %v835 = vsel %vm830, %v819, %v821
      %v836 = vsel %vm830, %v817, %v819
      %v837 = vsel %vm830, %v815, %v817
      %838 = vst [vmem:[#allocation2 + $0x460] sm:$0xff] %v837
      %839 = vst [vmem:[#allocation2 + $0x468] sm:$0xff] %v836
      %840 = vst [vmem:[#allocation2 + $0x470] sm:$0xff] %v835
      %841 = vst [vmem:[#allocation2 + $0x478] sm:$0xff] %v834
      %842 = vst [vmem:[#allocation2 + $0x480] sm:$0xff] %v833
      %843 = vst [vmem:[#allocation2 + $0x488] sm:$0xff] %v832
      %844 = vst [vmem:[#allocation2 + $0x490] sm:$0xff] %v831
      %845 = vrot.lane.b32.xlu0 %v208, 46
      %v846 = vpop.permute.xlu0 %845
      %847 = vrot.lane.b32.xlu0 %v209, 46
      %v848 = vpop.permute.xlu0 %847
      %849 = vrot.lane.b32.xlu0 %v210, 46
      %v850 = vpop.permute.xlu0 %849
      %851 = vrot.lane.b32.xlu0 %v211, 46
      %v852 = vpop.permute.xlu0 %851
      %853 = vrot.lane.b32.xlu0 %v212, 46
      %v854 = vpop.permute.xlu0 %853
      %855 = vrot.lane.b32.xlu0 %v213, 46
      %v856 = vpop.permute.xlu0 %855
      %857 = vrot.lane.b32.xlu0 %v214, 46
      %v858 = vpop.permute.xlu0 %857
      %859 = vrot.lane.b32.xlu0 %v215, 46
      %v860 = vpop.permute.xlu0 %859
      %vm861 = vcmp.lt.s32.totalorder %v240, 46
      %v862 = vsel %vm861, %v858, %v860
      %v863 = vsel %vm861, %v856, %v858
      %v864 = vsel %vm861, %v854, %v856
      %v865 = vsel %vm861, %v852, %v854
      %v866 = vsel %vm861, %v850, %v852
      %v867 = vsel %vm861, %v848, %v850
      %v868 = vsel %vm861, %v846, %v848
      %869 = vst [vmem:[#allocation2 + $0x498] sm:$0xff] %v868
      %870 = vst [vmem:[#allocation2 + $0x4a0] sm:$0xff] %v867
      %871 = vst [vmem:[#allocation2 + $0x4a8] sm:$0xff] %v866
      %872 = vst [vmem:[#allocation2 + $0x4b0] sm:$0xff] %v865
      %873 = vst [vmem:[#allocation2 + $0x4b8] sm:$0xff] %v864
      %874 = vst [vmem:[#allocation2 + $0x4c0] sm:$0xff] %v863
      %875 = vst [vmem:[#allocation2 + $0x4c8] sm:$0xff] %v862
      %876 = vrot.lane.b32.xlu0 %v208, 45
      %v877 = vpop.permute.xlu0 %876
      %878 = vrot.lane.b32.xlu0 %v209, 45
      %v879 = vpop.permute.xlu0 %878
      %880 = vrot.lane.b32.xlu0 %v210, 45
      %v881 = vpop.permute.xlu0 %880
      %882 = vrot.lane.b32.xlu0 %v211, 45
      %v883 = vpop.permute.xlu0 %882
      %884 = vrot.lane.b32.xlu0 %v212, 45
      %v885 = vpop.permute.xlu0 %884
      %886 = vrot.lane.b32.xlu0 %v213, 45
      %v887 = vpop.permute.xlu0 %886
      %888 = vrot.lane.b32.xlu0 %v214, 45
      %v889 = vpop.permute.xlu0 %888
      %890 = vrot.lane.b32.xlu0 %v215, 45
      %v891 = vpop.permute.xlu0 %890
      %vm892 = vcmp.lt.s32.totalorder %v240, 45
      %v893 = vsel %vm892, %v889, %v891
      %v894 = vsel %vm892, %v887, %v889
      %v895 = vsel %vm892, %v885, %v887
      %v896 = vsel %vm892, %v883, %v885
      %v897 = vsel %vm892, %v881, %v883
      %v898 = vsel %vm892, %v879, %v881
      %v899 = vsel %vm892, %v877, %v879
      %900 = vst [vmem:[#allocation2 + $0x4d0] sm:$0xff] %v899
      %901 = vst [vmem:[#allocation2 + $0x4d8] sm:$0xff] %v898
      %902 = vst [vmem:[#allocation2 + $0x4e0] sm:$0xff] %v897
      %903 = vst [vmem:[#allocation2 + $0x4e8] sm:$0xff] %v896
      %904 = vst [vmem:[#allocation2 + $0x4f0] sm:$0xff] %v895
      %905 = vst [vmem:[#allocation2 + $0x4f8] sm:$0xff] %v894
      %906 = vst [vmem:[#allocation2 + $0x500] sm:$0xff] %v893
      %907 = vrot.lane.b32.xlu0 %v208, 44
      %v908 = vpop.permute.xlu0 %907
      %909 = vrot.lane.b32.xlu0 %v209, 44
      %v910 = vpop.permute.xlu0 %909
      %911 = vrot.lane.b32.xlu0 %v210, 44
      %v912 = vpop.permute.xlu0 %911
      %913 = vrot.lane.b32.xlu0 %v211, 44
      %v914 = vpop.permute.xlu0 %913
      %915 = vrot.lane.b32.xlu0 %v212, 44
      %v916 = vpop.permute.xlu0 %915
      %917 = vrot.lane.b32.xlu0 %v213, 44
      %v918 = vpop.permute.xlu0 %917
      %919 = vrot.lane.b32.xlu0 %v214, 44
      %v920 = vpop.permute.xlu0 %919
      %921 = vrot.lane.b32.xlu0 %v215, 44
      %v922 = vpop.permute.xlu0 %921
      %vm923 = vcmp.lt.s32.totalorder %v240, 44
      %v924 = vsel %vm923, %v920, %v922
      %v925 = vsel %vm923, %v918, %v920
      %v926 = vsel %vm923, %v916, %v918
      %v927 = vsel %vm923, %v914, %v916
      %v928 = vsel %vm923, %v912, %v914
      %v929 = vsel %vm923, %v910, %v912
      %v930 = vsel %vm923, %v908, %v910
      %931 = vst [vmem:[#allocation2 + $0x508] sm:$0xff] %v930
      %932 = vst [vmem:[#allocation2 + $0x510] sm:$0xff] %v929
      %933 = vst [vmem:[#allocation2 + $0x518] sm:$0xff] %v928
      %934 = vst [vmem:[#allocation2 + $0x520] sm:$0xff] %v927
      %935 = vst [vmem:[#allocation2 + $0x528] sm:$0xff] %v926
      %936 = vst [vmem:[#allocation2 + $0x530] sm:$0xff] %v925
      %937 = vst [vmem:[#allocation2 + $0x538] sm:$0xff] %v924
      %938 = vrot.lane.b32.xlu0 %v208, 36
      %v939 = vpop.permute.xlu0 %938
      %940 = vrot.lane.b32.xlu0 %v209, 36
      %v941 = vpop.permute.xlu0 %940
      %942 = vrot.lane.b32.xlu0 %v210, 36
      %v943 = vpop.permute.xlu0 %942
      %944 = vrot.lane.b32.xlu0 %v211, 36
      %v945 = vpop.permute.xlu0 %944
      %946 = vrot.lane.b32.xlu0 %v212, 36
      %v947 = vpop.permute.xlu0 %946
      %948 = vrot.lane.b32.xlu0 %v213, 36
      %v949 = vpop.permute.xlu0 %948
      %950 = vrot.lane.b32.xlu0 %v214, 36
      %v951 = vpop.permute.xlu0 %950
      %952 = vrot.lane.b32.xlu0 %v215, 36
      %v953 = vpop.permute.xlu0 %952
      %vm954 = vcmp.lt.s32.totalorder %v240, 36
      %v955 = vsel %vm954, %v951, %v953
      %v956 = vsel %vm954, %v949, %v951
      %v957 = vsel %vm954, %v947, %v949
      %v958 = vsel %vm954, %v945, %v947
      %v959 = vsel %vm954, %v943, %v945
      %v960 = vsel %vm954, %v941, %v943
      %v961 = vsel %vm954, %v939, %v941
      %962 = vst [vmem:[#allocation2 + $0x540] sm:$0xff] %v961
      %963 = vst [vmem:[#allocation2 + $0x548] sm:$0xff] %v960
      %964 = vst [vmem:[#allocation2 + $0x550] sm:$0xff] %v959
      %965 = vst [vmem:[#allocation2 + $0x558] sm:$0xff] %v958
      %966 = vst [vmem:[#allocation2 + $0x560] sm:$0xff] %v957
      %967 = vst [vmem:[#allocation2 + $0x568] sm:$0xff] %v956
      %968 = vst [vmem:[#allocation2 + $0x570] sm:$0xff] %v955
      %969 = vrot.lane.b32.xlu0 %v208, 35
      %v970 = vpop.permute.xlu0 %969
      %971 = vrot.lane.b32.xlu0 %v209, 35
      %v972 = vpop.permute.xlu0 %971
      %973 = vrot.lane.b32.xlu0 %v210, 35
      %v974 = vpop.permute.xlu0 %973
      %975 = vrot.lane.b32.xlu0 %v211, 35
      %v976 = vpop.permute.xlu0 %975
      %977 = vrot.lane.b32.xlu0 %v212, 35
      %v978 = vpop.permute.xlu0 %977
      %979 = vrot.lane.b32.xlu0 %v213, 35
      %v980 = vpop.permute.xlu0 %979
      %981 = vrot.lane.b32.xlu0 %v214, 35
      %v982 = vpop.permute.xlu0 %981
      %983 = vrot.lane.b32.xlu0 %v215, 35
      %v984 = vpop.permute.xlu0 %983
      %vm985 = vcmp.lt.s32.totalorder %v240, 35
      %v986 = vsel %vm985, %v982, %v984
      %v987 = vsel %vm985, %v980, %v982
      %v988 = vsel %vm985, %v978, %v980
      %v989 = vsel %vm985, %v976, %v978
      %v990 = vsel %vm985, %v974, %v976
      %v991 = vsel %vm985, %v972, %v974
      %v992 = vsel %vm985, %v970, %v972
      %993 = vst [vmem:[#allocation2 + $0x578] sm:$0xff] %v992
      %994 = vst [vmem:[#allocation2 + $0x580] sm:$0xff] %v991
      %995 = vst [vmem:[#allocation2 + $0x588] sm:$0xff] %v990
      %996 = vst [vmem:[#allocation2 + $0x590] sm:$0xff] %v989
      %997 = vst [vmem:[#allocation2 + $0x598] sm:$0xff] %v988
      %998 = vst [vmem:[#allocation2 + $0x5a0] sm:$0xff] %v987
      %999 = vst [vmem:[#allocation2 + $0x5a8] sm:$0xff] %v986
      %1000 = vrot.lane.b32.xlu0 %v208, 34
      %v1001 = vpop.permute.xlu0 %1000
      %1002 = vrot.lane.b32.xlu0 %v209, 34
      %v1003 = vpop.permute.xlu0 %1002
      %1004 = vrot.lane.b32.xlu0 %v210, 34
      %v1005 = vpop.permute.xlu0 %1004
      %1006 = vrot.lane.b32.xlu0 %v211, 34
      %v1007 = vpop.permute.xlu0 %1006
      %1008 = vrot.lane.b32.xlu0 %v212, 34
      %v1009 = vpop.permute.xlu0 %1008
      %1010 = vrot.lane.b32.xlu0 %v213, 34
      %v1011 = vpop.permute.xlu0 %1010
      %1012 = vrot.lane.b32.xlu0 %v214, 34
      %v1013 = vpop.permute.xlu0 %1012
      %1014 = vrot.lane.b32.xlu0 %v215, 34
      %v1015 = vpop.permute.xlu0 %1014
      %vm1016 = vcmp.lt.s32.totalorder %v240, 34
      %v1017 = vsel %vm1016, %v1013, %v1015
      %v1018 = vsel %vm1016, %v1011, %v1013
      %v1019 = vsel %vm1016, %v1009, %v1011
      %v1020 = vsel %vm1016, %v1007, %v1009
      %v1021 = vsel %vm1016, %v1005, %v1007
      %v1022 = vsel %vm1016, %v1003, %v1005
      %v1023 = vsel %vm1016, %v1001, %v1003
      %1024 = vst [vmem:[#allocation2 + $0x5b0] sm:$0xff] %v1023
      %1025 = vst [vmem:[#allocation2 + $0x5b8] sm:$0xff] %v1022
      %1026 = vst [vmem:[#allocation2 + $0x5c0] sm:$0xff] %v1021
      %1027 = vst [vmem:[#allocation2 + $0x5c8] sm:$0xff] %v1020
      %1028 = vst [vmem:[#allocation2 + $0x5d0] sm:$0xff] %v1019
      %1029 = vst [vmem:[#allocation2 + $0x5d8] sm:$0xff] %v1018
      %1030 = vst [vmem:[#allocation2 + $0x5e0] sm:$0xff] %v1017
      %v1031 = vld [vmem:[%s1] sm:$0xff]
      %v1032 = vld [vmem:[%s1 + $0x8] sm:$0xff]
      %v1033 = vld [vmem:[#allocation2] sm:$0xff]
      %v1034 = vld [vmem:[#allocation2 + $0x8] sm:$0xff]
      %v1035 = vld [vmem:[#allocation2 + $0x10] sm:$0xff]
      %v1036 = vld [vmem:[#allocation2 + $0x18] sm:$0xff]
      %v1037 = vld [vmem:[#allocation2 + $0x20] sm:$0xff]
      %v1038 = vld [vmem:[#allocation2 + $0x28] sm:$0xff]
      %v1039 = vld [vmem:[#allocation2 + $0x30] sm:$0xff]
      %v1040 = vld [vmem:[#allocation2 + $0x38] sm:$0xff]
      %v1041 = vld [vmem:[#allocation2 + $0x40] sm:$0xff]
      %v1042 = vld [vmem:[#allocation2 + $0x48] sm:$0xff]
      %v1043 = vld [vmem:[#allocation2 + $0x50] sm:$0xff]
      %v1044 = vld [vmem:[#allocation2 + $0x58] sm:$0xff]
      %v1045 = vld [vmem:[#allocation2 + $0x60] sm:$0xff]
      %v1046 = vld [vmem:[#allocation2 + $0x68] sm:$0xff]
      %v1047 = vld [vmem:[#allocation2 + $0x70] sm:$0xff]
      %v1048 = vld [vmem:[#allocation2 + $0x78] sm:$0xff]
      %v1049 = vld [vmem:[#allocation2 + $0x80] sm:$0xff]
      %v1050 = vld [vmem:[#allocation2 + $0x88] sm:$0xff]
      %v1051 = vld [vmem:[#allocation2 + $0x90] sm:$0xff]
      %v1052 = vld [vmem:[#allocation2 + $0x98] sm:$0xff]
      %v1053 = vld [vmem:[#allocation2 + $0xa0] sm:$0xff]
      %v1054 = vld [vmem:[#allocation2 + $0xa8] sm:$0xff]
      %v1055 = vld [vmem:[#allocation2 + $0xb0] sm:$0xff]
      %v1056 = vld [vmem:[#allocation2 + $0xb8] sm:$0xff]
      %v1057 = vld [vmem:[#allocation2 + $0xc0] sm:$0xff]
      %v1058 = vld [vmem:[#allocation2 + $0xc8] sm:$0xff]
      %v1059 = vld [vmem:[#allocation2 + $0xd0] sm:$0xff]
      %v1060 = vld [vmem:[#allocation2 + $0xd8] sm:$0xff]
      %v1061 = vld [vmem:[#allocation2 + $0xe0] sm:$0xff]
      %v1062 = vld [vmem:[#allocation2 + $0xe8] sm:$0xff]
      %v1063 = vld [vmem:[#allocation2 + $0xf0] sm:$0xff]
      %v1064 = vld [vmem:[#allocation2 + $0xf8] sm:$0xff]
      %v1065 = vld [vmem:[#allocation2 + $0x100] sm:$0xff]
      %v1066 = vld [vmem:[#allocation2 + $0x108] sm:$0xff]
      %v1067 = vld [vmem:[#allocation2 + $0x110] sm:$0xff]
      %v1068 = vld [vmem:[#allocation2 + $0x118] sm:$0xff]
      %v1069 = vld [vmem:[#allocation2 + $0x120] sm:$0xff]
      %v1070 = vld [vmem:[#allocation2 + $0x128] sm:$0xff]
      %v1071 = vld [vmem:[#allocation2 + $0x130] sm:$0xff]
      %v1072 = vld [vmem:[#allocation2 + $0x138] sm:$0xff]
      %v1073 = vld [vmem:[#allocation2 + $0x140] sm:$0xff]
      %v1074 = vld [vmem:[#allocation2 + $0x148] sm:$0xff]
      %v1075 = vld [vmem:[#allocation2 + $0x150] sm:$0xff]
      %v1076 = vld [vmem:[#allocation2 + $0x158] sm:$0xff]
      %v1077 = vld [vmem:[#allocation2 + $0x160] sm:$0xff]
      %v1078 = vld [vmem:[#allocation2 + $0x168] sm:$0xff]
      %v1079 = vld [vmem:[#allocation2 + $0x170] sm:$0xff]
      %v1080 = vld [vmem:[#allocation2 + $0x178] sm:$0xff]
      %v1081 = vld [vmem:[#allocation2 + $0x180] sm:$0xff]
      %v1082 = vld [vmem:[#allocation2 + $0x188] sm:$0xff]
      %v1083 = vld [vmem:[#allocation2 + $0x190] sm:$0xff]
      %v1084 = vld [vmem:[#allocation2 + $0x198] sm:$0xff]
      %v1085 = vld [vmem:[#allocation2 + $0x1a0] sm:$0xff]
      %v1086 = vld [vmem:[#allocation2 + $0x1a8] sm:$0xff]
      %v1087 = vld [vmem:[#allocation2 + $0x1b0] sm:$0xff]
      %v1088 = vld [vmem:[#allocation2 + $0x1b8] sm:$0xff]
      %v1089 = vld [vmem:[#allocation2 + $0x1c0] sm:$0xff]
      %v1090 = vld [vmem:[#allocation2 + $0x1c8] sm:$0xff]
      %v1091 = vld [vmem:[#allocation2 + $0x1d0] sm:$0xff]
      %v1092 = vld [vmem:[#allocation2 + $0x1d8] sm:$0xff]
      %v1093 = vld [vmem:[#allocation2 + $0x1e0] sm:$0xff]
      %v1094 = vld [vmem:[#allocation2 + $0x1e8] sm:$0xff]
      %v1095 = vld [vmem:[#allocation2 + $0x1f0] sm:$0xff]
      %v1096 = vld [vmem:[#allocation2 + $0x1f8] sm:$0xff]
      %v1097 = vld [vmem:[#allocation2 + $0x200] sm:$0xff]
      %v1098 = vld [vmem:[#allocation2 + $0x208] sm:$0xff]
      %v1099 = vld [vmem:[#allocation2 + $0x210] sm:$0xff]
      %v1100 = vld [vmem:[#allocation2 + $0x218] sm:$0xff]
      %v1101 = vld [vmem:[#allocation2 + $0x220] sm:$0xff]
      %v1102 = vld [vmem:[#allocation2 + $0x228] sm:$0xff]
      %v1103 = vld [vmem:[#allocation2 + $0x230] sm:$0xff]
      %v1104 = vld [vmem:[#allocation2 + $0x238] sm:$0xff]
      %v1105 = vld [vmem:[#allocation2 + $0x240] sm:$0xff]
      %v1106 = vld [vmem:[#allocation2 + $0x248] sm:$0xff]
      %v1107 = vld [vmem:[#allocation2 + $0x250] sm:$0xff]
      %v1108 = vld [vmem:[#allocation2 + $0x258] sm:$0xff]
      %v1109 = vld [vmem:[#allocation2 + $0x260] sm:$0xff]
      %v1110 = vld [vmem:[#allocation2 + $0x268] sm:$0xff]
      %v1111 = vld [vmem:[#allocation2 + $0x270] sm:$0xff]
      %v1112 = vld [vmem:[#allocation2 + $0x278] sm:$0xff]
      %v1113 = vld [vmem:[#allocation2 + $0x280] sm:$0xff]
      %v1114 = vld [vmem:[#allocation2 + $0x288] sm:$0xff]
      %v1115 = vld [vmem:[#allocation2 + $0x290] sm:$0xff]
      %v1116 = vld [vmem:[#allocation2 + $0x298] sm:$0xff]
      %v1117 = vld [vmem:[#allocation2 + $0x2a0] sm:$0xff]
      %v1118 = vld [vmem:[#allocation2 + $0x2a8] sm:$0xff]
      %v1119 = vld [vmem:[#allocation2 + $0x2b0] sm:$0xff]
      %v1120 = vld [vmem:[#allocation2 + $0x2b8] sm:$0xff]
      %v1121 = vld [vmem:[#allocation2 + $0x2c0] sm:$0xff]
      %v1122 = vld [vmem:[#allocation2 + $0x2c8] sm:$0xff]
      %v1123 = vld [vmem:[#allocation2 + $0x2d0] sm:$0xff]
      %v1124 = vld [vmem:[#allocation2 + $0x2d8] sm:$0xff]
      %v1125 = vld [vmem:[#allocation2 + $0x2e0] sm:$0xff]
      %v1126 = vld [vmem:[#allocation2 + $0x2e8] sm:$0xff]
      %v1127 = vld [vmem:[#allocation2 + $0x2f0] sm:$0xff]
      %v1128 = vld [vmem:[#allocation2 + $0x2f8] sm:$0xff]
      %v1129 = vld [vmem:[#allocation2 + $0x300] sm:$0xff]
      %v1130 = vld [vmem:[#allocation2 + $0x308] sm:$0xff]
      %v1131 = vld [vmem:[#allocation2 + $0x310] sm:$0xff]
      %v1132 = vld [vmem:[#allocation2 + $0x318] sm:$0xff]
      %v1133 = vld [vmem:[#allocation2 + $0x320] sm:$0xff]
      %v1134 = vld [vmem:[#allocation2 + $0x328] sm:$0xff]
      %v1135 = vld [vmem:[#allocation2 + $0x330] sm:$0xff]
      %v1136 = vld [vmem:[#allocation2 + $0x338] sm:$0xff]
      %v1137 = vld [vmem:[#allocation2 + $0x340] sm:$0xff]
      %v1138 = vld [vmem:[#allocation2 + $0x348] sm:$0xff]
      %v1139 = vld [vmem:[#allocation2 + $0x350] sm:$0xff]
      %v1140 = vld [vmem:[#allocation2 + $0x358] sm:$0xff]
      %v1141 = vld [vmem:[#allocation2 + $0x360] sm:$0xff]
      %v1142 = vld [vmem:[#allocation2 + $0x368] sm:$0xff]
      %v1143 = vld [vmem:[#allocation2 + $0x370] sm:$0xff]
      %v1144 = vld [vmem:[#allocation2 + $0x378] sm:$0xff]
      %v1145 = vld [vmem:[#allocation2 + $0x380] sm:$0xff]
      %v1146 = vld [vmem:[#allocation2 + $0x388] sm:$0xff]
      %v1147 = vld [vmem:[#allocation2 + $0x390] sm:$0xff]
      %v1148 = vld [vmem:[#allocation2 + $0x398] sm:$0xff]
      %v1149 = vld [vmem:[#allocation2 + $0x3a0] sm:$0xff]
      %v1150 = vld [vmem:[#allocation2 + $0x3a8] sm:$0xff]
      %v1151 = vld [vmem:[#allocation2 + $0x3b0] sm:$0xff]
      %v1152 = vld [vmem:[#allocation2 + $0x3b8] sm:$0xff]
      %v1153 = vld [vmem:[#allocation2 + $0x3c0] sm:$0xff]
      %v1154 = vld [vmem:[#allocation2 + $0x3c8] sm:$0xff]
      %v1155 = vld [vmem:[#allocation2 + $0x3d0] sm:$0xff]
      %v1156 = vld [vmem:[#allocation2 + $0x3d8] sm:$0xff]
      %v1157 = vld [vmem:[#allocation2 + $0x3e0] sm:$0xff]
      %v1158 = vld [vmem:[#allocation2 + $0x3e8] sm:$0xff]
      %v1159 = vld [vmem:[#allocation2 + $0x3f0] sm:$0xff]
      %v1160 = vld [vmem:[#allocation2 + $0x3f8] sm:$0xff]
      %v1161 = vld [vmem:[#allocation2 + $0x400] sm:$0xff]
      %v1162 = vld [vmem:[#allocation2 + $0x408] sm:$0xff]
      %v1163 = vld [vmem:[#allocation2 + $0x410] sm:$0xff]
      %v1164 = vld [vmem:[#allocation2 + $0x418] sm:$0xff]
      %v1165 = vld [vmem:[#allocation2 + $0x420] sm:$0xff]
      %v1166 = vld [vmem:[#allocation2 + $0x428] sm:$0xff]
      %v1167 = vld [vmem:[#allocation2 + $0x430] sm:$0xff]
      %v1168 = vld [vmem:[#allocation2 + $0x438] sm:$0xff]
      %v1169 = vld [vmem:[#allocation2 + $0x440] sm:$0xff]
      %v1170 = vld [vmem:[#allocation2 + $0x448] sm:$0xff]
      %v1171 = vld [vmem:[#allocation2 + $0x450] sm:$0xff]
      %v1172 = vld [vmem:[#allocation2 + $0x458] sm:$0xff]
      %v1173 = vld [vmem:[#allocation2 + $0x460] sm:$0xff]
      %v1174 = vld [vmem:[#allocation2 + $0x468] sm:$0xff]
      %v1175 = vld [vmem:[#allocation2 + $0x470] sm:$0xff]
      %v1176 = vld [vmem:[#allocation2 + $0x478] sm:$0xff]
      %v1177 = vld [vmem:[#allocation2 + $0x480] sm:$0xff]
      %v1178 = vld [vmem:[#allocation2 + $0x488] sm:$0xff]
      %v1179 = vld [vmem:[#allocation2 + $0x490] sm:$0xff]
      %v1180 = vld [vmem:[#allocation2 + $0x498] sm:$0xff]
      %v1181 = vld [vmem:[#allocation2 + $0x4a0] sm:$0xff]
      %v1182 = vld [vmem:[#allocation2 + $0x4a8] sm:$0xff]
      %v1183 = vld [vmem:[#allocation2 + $0x4b0] sm:$0xff]
      %v1184 = vld [vmem:[#allocation2 + $0x4b8] sm:$0xff]
      %v1185 = vld [vmem:[#allocation2 + $0x4c0] sm:$0xff]
      %v1186 = vld [vmem:[#allocation2 + $0x4c8] sm:$0xff]
      %v1187 = vld [vmem:[#allocation2 + $0x4d0] sm:$0xff]
      %v1188 = vld [vmem:[#allocation2 + $0x4d8] sm:$0xff]
      %v1189 = vld [vmem:[#allocation2 + $0x4e0] sm:$0xff]
      %v1190 = vld [vmem:[#allocation2 + $0x4e8] sm:$0xff]
      %v1191 = vld [vmem:[#allocation2 + $0x4f0] sm:$0xff]
      %v1192 = vld [vmem:[#allocation2 + $0x4f8] sm:$0xff]
      %v1193 = vld [vmem:[#allocation2 + $0x500] sm:$0xff]
      %v1194 = vld [vmem:[#allocation2 + $0x508] sm:$0xff]
      %v1195 = vld [vmem:[#allocation2 + $0x510] sm:$0xff]
      %v1196 = vld [vmem:[#allocation2 + $0x518] sm:$0xff]
      %v1197 = vld [vmem:[#allocation2 + $0x520] sm:$0xff]
      %v1198 = vld [vmem:[#allocation2 + $0x528] sm:$0xff]
      %v1199 = vld [vmem:[#allocation2 + $0x530] sm:$0xff]
      %v1200 = vld [vmem:[#allocation2 + $0x538] sm:$0xff]
      %v1201 = vld [vmem:[#allocation2 + $0x540] sm:$0xff]
      %v1202 = vld [vmem:[#allocation2 + $0x548] sm:$0xff]
      %v1203 = vld [vmem:[#allocation2 + $0x550] sm:$0xff]
      %v1204 = vld [vmem:[#allocation2 + $0x558] sm:$0xff]
      %v1205 = vld [vmem:[#allocation2 + $0x560] sm:$0xff]
      %v1206 = vld [vmem:[#allocation2 + $0x568] sm:$0xff]
      %v1207 = vld [vmem:[#allocation2 + $0x570] sm:$0xff]
      %v1208 = vld [vmem:[#allocation2 + $0x578] sm:$0xff]
      %v1209 = vld [vmem:[#allocation2 + $0x580] sm:$0xff]
      %v1210 = vld [vmem:[#allocation2 + $0x588] sm:$0xff]
      %v1211 = vld [vmem:[#allocation2 + $0x590] sm:$0xff]
      %v1212 = vld [vmem:[#allocation2 + $0x598] sm:$0xff]
      %v1213 = vld [vmem:[#allocation2 + $0x5a0] sm:$0xff]
      %v1214 = vld [vmem:[#allocation2 + $0x5a8] sm:$0xff]
      %v1215 = vld [vmem:[#allocation2 + $0x5b0] sm:$0xff]
      %v1216 = vld [vmem:[#allocation2 + $0x5b8] sm:$0xff]
      %v1217 = vld [vmem:[#allocation2 + $0x5c0] sm:$0xff]
      %v1218 = vld [vmem:[#allocation2 + $0x5c8] sm:$0xff]
      %v1219 = vld [vmem:[#allocation2 + $0x5d0] sm:$0xff]
      %v1220 = vld [vmem:[#allocation2 + $0x5d8] sm:$0xff]
      %v1221 = vld [vmem:[#allocation2 + $0x5e0] sm:$0xff]
      %v1222 = vld [vmem:[%s2] sm:$0xff]
      %1224 = vset.pattern.permute.xlu0 0
      %1225 = vperm.xlu0 %1224, %v1222
      %v1226 = vpop.permute.xlu0 %1225
      %vm1228 = vcmask 719872
      %v1230 = vsel %vm1228, %v1032, 0
      %1232 = vmatprep.subr.mxu0 %v1034
      %1233 = vmatpush1.msra.mxu0 %v1033
      %1234 = vmatprep.subr.mxu0 %v1041
      %1235 = vmatpush1.msra.mxu0 %v1040
      %1236 = vmatprep.subr.mxu0 %v1048
      %1237 = vmatpush1.msra.mxu0 %v1047
      %1238 = vmatprep.subr.mxu0 %v1055
      %1239 = vmatpush1.msra.mxu0 %v1054
      %1240 = vmatprep.subr.mxu0 %v1062
      %1241 = vmatpush1.msra.mxu0 %v1061
      %1242 = vmatprep.subr.mxu0 %v1069
      %1243 = vmatpush1.msra.mxu0 %v1068
      %1244 = vmatprep.subr.mxu0 %v1076
      %1245 = vmatpush1.msra.mxu0 %v1075
      %1246 = vmatprep.subr.mxu0 %v1083
      %1247 = vmatpush1.msra.mxu0 %v1082
      %1248 = vmatprep.subr.mxu0 %v1090
      %1249 = vmatpush1.msra.mxu0 %v1089
      %1250 = vmatprep.subr.mxu0 %v1097
      %1251 = vmatpush1.msra.mxu0 %v1096
      %1252 = vmatprep.subr.mxu0 %v1104
      %1253 = vmatpush1.msra.mxu0 %v1103
      %1254 = vmatprep.subr.mxu0 %v1111
      %1255 = vmatpush1.msra.mxu0 %v1110
      %1256 = vmatprep.subr.mxu0 %v1118
      %1257 = vmatpush1.msra.mxu0 %v1117
      %1258 = vmatprep.subr.mxu0 %v1125
      %1259 = vmatpush1.msra.mxu0 %v1124
      %1260 = vmatprep.subr.mxu0 %v1132
      %1261 = vmatpush1.msra.mxu0 %v1131
      %1262 = vmatprep.subr.mxu0 %v1139
      %1263 = vmatpush1.msra.mxu0 %v1138
      %1264 = vmatprep.subr.mxu0 %v1146
      %1265 = vmatpush1.msra.mxu0 %v1145
      %1266 = vmatprep.subr.mxu0 %v1153
      %1267 = vmatpush1.msra.mxu0 %v1152
      %1268 = vmatprep.subr.mxu0 %v1160
      %1269 = vmatpush1.msra.mxu0 %v1159
      %1270 = vmatprep.subr.mxu0 %v1167
      %1271 = vmatpush1.msra.mxu0 %v1166
      %1272 = vmatprep.subr.mxu0 %v1174
      %1273 = vmatpush1.msra.mxu0 %v1173
      %1274 = vmatprep.subr.mxu0 %v1181
      %1275 = vmatpush1.msra.mxu0 %v1180
      %1276 = vmatprep.subr.mxu0 %v1188
      %1277 = vmatpush1.msra.mxu0 %v1187
      %1278 = vmatprep.subr.mxu0 %v1195
      %1279 = vmatpush1.msra.mxu0 %v1194
      %1280 = vmatprep.subr.mxu0 %v1202
      %1281 = vmatpush1.msra.mxu0 %v1201
      %1282 = vmatprep.subr.mxu0 %v1209
      %1283 = vmatpush1.msra.mxu0 %v1208
      %1284 = vmatprep.subr.mxu0 %v1216
      %1285 = vmatpush1.msra.mxu0 %v1215
      %1286 = vmatprep.subr.mxu0 0.0
      %1287 = vmatpush1.msra.mxu0 0.0
      %1288 = vmatprep.subr.mxu0 0.0
      %1289 = vmatpush1.msra.mxu0 0.0
      %1290 = vmatprep.subr.mxu0 0.0
      %1291 = vmatpush1.msra.mxu0 0.0
      %1292 = vmatprep.subr.mxu0 0.0
      %1293 = vmatpush1.msra.mxu0 0.0
      %1294 = vmatprep.subr.mxu0 0.0
      %1295 = vmatpush1.msra.mxu0 0.0
      %1296 = vmatprep.mubr.f32.mxu0 %v1230
      %1297 = vmatmul.mubr.f32.gmra.mrb[0].mxu0 %v1031
      %v1298 = vpop.f32.mrb[0].mxu0
      %v1299 = vadd.f32 %v1226, %v1298
      %v1300 = vpop.f32.mrb[0].mxu0
      %v1301 = vadd.f32 %v1226, %v1300
      %1302 = vdwg.mxu0
      %1303 = vmatprep.subr.mxu0 %v1036
      %1304 = vmatpush1.msra.mxu0 %v1035
      %1305 = vmatprep.subr.mxu0 %v1043
      %1306 = vmatpush1.msra.mxu0 %v1042
      %1307 = vmatprep.subr.mxu0 %v1050
      %1308 = vmatpush1.msra.mxu0 %v1049
      %1309 = vmatprep.subr.mxu0 %v1057
      %1310 = vmatpush1.msra.mxu0 %v1056
      %1311 = vmatprep.subr.mxu0 %v1064
      %1312 = vmatpush1.msra.mxu0 %v1063
      %1313 = vmatprep.subr.mxu0 %v1071
      %1314 = vmatpush1.msra.mxu0 %v1070
      %1315 = vmatprep.subr.mxu0 %v1078
      %1316 = vmatpush1.msra.mxu0 %v1077
      %1317 = vmatprep.subr.mxu0 %v1085
      %1318 = vmatpush1.msra.mxu0 %v1084
      %1319 = vmatprep.subr.mxu0 %v1092
      %1320 = vmatpush1.msra.mxu0 %v1091
      %1321 = vmatprep.subr.mxu0 %v1099
      %1322 = vmatpush1.msra.mxu0 %v1098
      %1323 = vmatprep.subr.mxu0 %v1106
      %1324 = vmatpush1.msra.mxu0 %v1105
      %1325 = vmatprep.subr.mxu0 %v1113
      %1326 = vmatpush1.msra.mxu0 %v1112
      %1327 = vmatprep.subr.mxu0 %v1120
      %1328 = vmatpush1.msra.mxu0 %v1119
      %1329 = vmatprep.subr.mxu0 %v1127
      %1330 = vmatpush1.msra.mxu0 %v1126
      %1331 = vmatprep.subr.mxu0 %v1134
      %1332 = vmatpush1.msra.mxu0 %v1133
      %1333 = vmatprep.subr.mxu0 %v1141
      %1334 = vmatpush1.msra.mxu0 %v1140
      %1335 = vmatprep.subr.mxu0 %v1148
      %1336 = vmatpush1.msra.mxu0 %v1147
      %1337 = vmatprep.subr.mxu0 %v1155
      %1338 = vmatpush1.msra.mxu0 %v1154
      %1339 = vmatprep.subr.mxu0 %v1162
      %1340 = vmatpush1.msra.mxu0 %v1161
      %1341 = vmatprep.subr.mxu0 %v1169
      %1342 = vmatpush1.msra.mxu0 %v1168
      %1343 = vmatprep.subr.mxu0 %v1176
      %1344 = vmatpush1.msra.mxu0 %v1175
      %1345 = vmatprep.subr.mxu0 %v1183
      %1346 = vmatpush1.msra.mxu0 %v1182
      %1347 = vmatprep.subr.mxu0 %v1190
      %1348 = vmatpush1.msra.mxu0 %v1189
      %1349 = vmatprep.subr.mxu0 %v1197
      %1350 = vmatpush1.msra.mxu0 %v1196
      %1351 = vmatprep.subr.mxu0 %v1204
      %1352 = vmatpush1.msra.mxu0 %v1203
      %1353 = vmatprep.subr.mxu0 %v1211
      %1354 = vmatpush1.msra.mxu0 %v1210
      %1355 = vmatprep.subr.mxu0 %v1218
      %1356 = vmatpush1.msra.mxu0 %v1217
      %1357 = vmatprep.subr.mxu0 0.0
      %1358 = vmatpush1.msra.mxu0 0.0
      %1359 = vmatprep.subr.mxu0 0.0
      %1360 = vmatpush1.msra.mxu0 0.0
      %1361 = vmatprep.subr.mxu0 0.0
      %1362 = vmatpush1.msra.mxu0 0.0
      %1363 = vmatprep.subr.mxu0 0.0
      %1364 = vmatpush1.msra.mxu0 0.0
      %1365 = vmatprep.subr.mxu0 0.0
      %1366 = vmatpush1.msra.mxu0 0.0
      %1367 = vmatprep.mubr.f32.mxu0 %v1230
      %1368 = vmatmul.mubr.f32.gmra.mrb[0].mxu0 %v1031
      %v1369 = vpop.f32.mrb[0].mxu0
      %v1370 = vadd.f32 %v1226, %v1369
      %v1371 = vpop.f32.mrb[0].mxu0
      %v1372 = vadd.f32 %v1226, %v1371
      %1373 = vdwg.mxu0
      %1374 = vmatprep.subr.mxu0 %v1038
      %1375 = vmatpush1.msra.mxu0 %v1037
      %1376 = vmatprep.subr.mxu0 %v1045
      %1377 = vmatpush1.msra.mxu0 %v1044
      %1378 = vmatprep.subr.mxu0 %v1052
      %1379 = vmatpush1.msra.mxu0 %v1051
      %1380 = vmatprep.subr.mxu0 %v1059
      %1381 = vmatpush1.msra.mxu0 %v1058
      %1382 = vmatprep.subr.mxu0 %v1066
      %1383 = vmatpush1.msra.mxu0 %v1065
      %1384 = vmatprep.subr.mxu0 %v1073
      %1385 = vmatpush1.msra.mxu0 %v1072
      %1386 = vmatprep.subr.mxu0 %v1080
      %1387 = vmatpush1.msra.mxu0 %v1079
      %1388 = vmatprep.subr.mxu0 %v1087
      %1389 = vmatpush1.msra.mxu0 %v1086
      %1390 = vmatprep.subr.mxu0 %v1094
      %1391 = vmatpush1.msra.mxu0 %v1093
      %1392 = vmatprep.subr.mxu0 %v1101
      %1393 = vmatpush1.msra.mxu0 %v1100
      %1394 = vmatprep.subr.mxu0 %v1108
      %1395 = vmatpush1.msra.mxu0 %v1107
      %1396 = vmatprep.subr.mxu0 %v1115
      %1397 = vmatpush1.msra.mxu0 %v1114
      %1398 = vmatprep.subr.mxu0 %v1122
      %1399 = vmatpush1.msra.mxu0 %v1121
      %1400 = vmatprep.subr.mxu0 %v1129
      %1401 = vmatpush1.msra.mxu0 %v1128
      %1402 = vmatprep.subr.mxu0 %v1136
      %1403 = vmatpush1.msra.mxu0 %v1135
      %1404 = vmatprep.subr.mxu0 %v1143
      %1405 = vmatpush1.msra.mxu0 %v1142
      %1406 = vmatprep.subr.mxu0 %v1150
      %1407 = vmatpush1.msra.mxu0 %v1149
      %1408 = vmatprep.subr.mxu0 %v1157
      %1409 = vmatpush1.msra.mxu0 %v1156
      %1410 = vmatprep.subr.mxu0 %v1164
      %1411 = vmatpush1.msra.mxu0 %v1163
      %1412 = vmatprep.subr.mxu0 %v1171
      %1413 = vmatpush1.msra.mxu0 %v1170
      %1414 = vmatprep.subr.mxu0 %v1178
      %1415 = vmatpush1.msra.mxu0 %v1177
      %1416 = vmatprep.subr.mxu0 %v1185
      %1417 = vmatpush1.msra.mxu0 %v1184
      %1418 = vmatprep.subr.mxu0 %v1192
      %1419 = vmatpush1.msra.mxu0 %v1191
      %1420 = vmatprep.subr.mxu0 %v1199
      %1421 = vmatpush1.msra.mxu0 %v1198
      %1422 = vmatprep.subr.mxu0 %v1206
      %1423 = vmatpush1.msra.mxu0 %v1205
      %1424 = vmatprep.subr.mxu0 %v1213
      %1425 = vmatpush1.msra.mxu0 %v1212
      %1426 = vmatprep.subr.mxu0 %v1220
      %1427 = vmatpush1.msra.mxu0 %v1219
      %1428 = vmatprep.subr.mxu0 0.0
      %1429 = vmatpush1.msra.mxu0 0.0
      %1430 = vmatprep.subr.mxu0 0.0
      %1431 = vmatpush1.msra.mxu0 0.0
      %1432 = vmatprep.subr.mxu0 0.0
      %1433 = vmatpush1.msra.mxu0 0.0
      %1434 = vmatprep.subr.mxu0 0.0
      %1435 = vmatpush1.msra.mxu0 0.0
      %1436 = vmatprep.subr.mxu0 0.0
      %1437 = vmatpush1.msra.mxu0 0.0
      %1438 = vmatprep.mubr.f32.mxu0 %v1230
      %1439 = vmatmul.mubr.f32.gmra.mrb[0].mxu0 %v1031
      %v1440 = vpop.f32.mrb[0].mxu0
      %v1441 = vadd.f32 %v1226, %v1440
      %v1442 = vpop.f32.mrb[0].mxu0
      %v1443 = vadd.f32 %v1226, %v1442
      %1444 = vdwg.mxu0
      %1445 = vmatprep.subr.mxu0 0.0
      %1446 = vmatpush1.msra.mxu0 %v1039
      %1447 = vmatprep.subr.mxu0 0.0
      %1448 = vmatpush1.msra.mxu0 %v1046
      %1449 = vmatprep.subr.mxu0 0.0
      %1450 = vmatpush1.msra.mxu0 %v1053
      %1451 = vmatprep.subr.mxu0 0.0
      %1452 = vmatpush1.msra.mxu0 %v1060
      %1453 = vmatprep.subr.mxu0 0.0
      %1454 = vmatpush1.msra.mxu0 %v1067
      %1455 = vmatprep.subr.mxu0 0.0
      %1456 = vmatpush1.msra.mxu0 %v1074
      %1457 = vmatprep.subr.mxu0 0.0
      %1458 = vmatpush1.msra.mxu0 %v1081
      %1459 = vmatprep.subr.mxu0 0.0
      %1460 = vmatpush1.msra.mxu0 %v1088
      %1461 = vmatprep.subr.mxu0 0.0
      %1462 = vmatpush1.msra.mxu0 %v1095
      %1463 = vmatprep.subr.mxu0 0.0
      %1464 = vmatpush1.msra.mxu0 %v1102
      %1465 = vmatprep.subr.mxu0 0.0
      %1466 = vmatpush1.msra.mxu0 %v1109
      %1467 = vmatprep.subr.mxu0 0.0
      %1468 = vmatpush1.msra.mxu0 %v1116
      %1469 = vmatprep.subr.mxu0 0.0
      %1470 = vmatpush1.msra.mxu0 %v1123
      %1471 = vmatprep.subr.mxu0 0.0
      %1472 = vmatpush1.msra.mxu0 %v1130
      %1473 = vmatprep.subr.mxu0 0.0
      %1474 = vmatpush1.msra.mxu0 %v1137
      %1475 = vmatprep.subr.mxu0 0.0
      %1476 = vmatpush1.msra.mxu0 %v1144
      %1477 = vmatprep.subr.mxu0 0.0
      %1478 = vmatpush1.msra.mxu0 %v1151
      %1479 = vmatprep.subr.mxu0 0.0
      %1480 = vmatpush1.msra.mxu0 %v1158
      %1481 = vmatprep.subr.mxu0 0.0
      %1482 = vmatpush1.msra.mxu0 %v1165
      %1483 = vmatprep.subr.mxu0 0.0
      %1484 = vmatpush1.msra.mxu0 %v1172
      %1485 = vmatprep.subr.mxu0 0.0
      %1486 = vmatpush1.msra.mxu0 %v1179
      %1487 = vmatprep.subr.mxu0 0.0
      %1488 = vmatpush1.msra.mxu0 %v1186
      %1489 = vmatprep.subr.mxu0 0.0
      %1490 = vmatpush1.msra.mxu0 %v1193
      %1491 = vmatprep.subr.mxu0 0.0
      %1492 = vmatpush1.msra.mxu0 %v1200
      %1493 = vmatprep.subr.mxu0 0.0
      %1494 = vmatpush1.msra.mxu0 %v1207
      %1495 = vmatprep.subr.mxu0 0.0
      %1496 = vmatpush1.msra.mxu0 %v1214
      %1497 = vmatprep.subr.mxu0 0.0
      %1498 = vmatpush1.msra.mxu0 %v1221
      %1499 = vmatprep.subr.mxu0 0.0
      %1500 = vmatpush1.msra.mxu0 0.0
      %1501 = vmatprep.subr.mxu0 0.0
      %1502 = vmatpush1.msra.mxu0 0.0
      %1503 = vmatprep.subr.mxu0 0.0
      %1504 = vmatpush1.msra.mxu0 0.0
      %1505 = vmatprep.subr.mxu0 0.0
      %1506 = vmatpush1.msra.mxu0 0.0
      %1507 = vmatprep.subr.mxu0 0.0
      %1508 = vmatpush1.msra.mxu0 0.0
      %1509 = vmatprep.mubr.f32.mxu0 %v1230
      %1510 = vmatmul.mubr.f32.gmra.mrb[0].mxu0 %v1031
      %v1511 = vpop.f32.mrb[0].mxu0
      %v1512 = vadd.f32 %v1226, %v1511
      %v1513 = vpop.f32.mrb[0].mxu0
      %1514 = vdwg.mxu0
      %v1515 = vmax.f32 %v1299, 0.0
      %v1516 = vmax.f32 %v1301, 0.0
      %v1517 = vmax.f32 %v1370, 0.0
      %v1518 = vmax.f32 %v1372, 0.0
      %v1519 = vmax.f32 %v1441, 0.0
      %v1520 = vmax.f32 %v1443, 0.0
      %v1521 = vmax.f32 %v1512, 0.0
      %1522 = vst [vmem:[%s206] sm:$0xff] %v1515
      %1523 = vst [vmem:[%s206 + $0x8] sm:$0xff] %v1516
      %1524 = vst [vmem:[%s206 + $0x10] sm:$0xff] %v1517
      %1525 = vst [vmem:[%s206 + $0x18] sm:$0xff] %v1518
      %1526 = vst [vmem:[%s206 + $0x20] sm:$0xff] %v1519
      %1527 = vst [vmem:[%s206 + $0x28] sm:$0xff] %v1520
      %1528 = vst [vmem:[%s206 + $0x30] sm:$0xff] %v1521
      %p1529 = scmp.lt.s32.totalorder %s18, 1
      %s1530 = scalar_select %p1529, %s18, 1
      %p1531 = scmp.lt.s32.totalorder %s19, 0
      %s1532 = scalar_select %p1531, %s19, 0
      %s1533 = smul.addr %s1532, 7
      %s1534 = smul.addr %s1530, 7
      %s1535 = sadd.s32 %s1533, %s1534
      %s1536 = smul.addr %s1535, 8
      %s1537 = scalar_lea.vmem %s3, %s1536
      // Predicated region
      $region33: #{post_activation_3d_nobn.1} parent=31 // pred_check
        %p1538 = pneg %p116
      $region34: #{post_activation_3d_nobn.1} parent=31 // pred_check_branch
        %1540 = sbr.rel (%p1538) target = $region36
      $region35: #{post_activation_3d_nobn.1} parent=31 // pred_region
        _
      $region36: #{post_activation_3d_nobn.1} parent=31 // pred_fallthru
        _
    $region32: #{post_activation_3d_nobn.1} parent=5 // pred_fallthru
      _
    %p1541 = scmp.le.s32.totalorder 2, %s9
    // Predicated region
    $region37: #{post_activation_3d_nobn.1} parent=5 // pred_check
      %p1542 = pneg %p1541
    $region38: #{post_activation_3d_nobn.1} parent=5 // pred_check_branch
      %1544 = sbr.rel (%p1542) target = $region40
    $region39: #{post_activation_3d_nobn.1} parent=5 // pred_region
      %s1545 = ssub.s32 %s9, 2
      // Predicated region
      $region41: #{post_activation_3d_nobn.1} parent=39 // pred_check
        %p1546 = pneg %p122
      $region42: #{post_activation_3d_nobn.1} parent=39 // pred_check_branch
        %1548 = sbr.rel (%p1546) target = $region44
      $region43: #{post_activation_3d_nobn.1} parent=39 // pred_region
        %p1549 = scmp.lt.s32.totalorder %s20, 1
        %s1550 = scalar_select %p1549, %s20, 1
        %p1551 = scmp.lt.s32.totalorder %s21, 0
        %s1552 = scalar_select %p1551, %s21, 0
        %s1553 = smul.addr %s1552, 7
        %s1554 = smul.addr %s1550, 7
        %s1555 = sadd.s32 %s1553, %s1554
        %s1556 = smul.addr %s1555, 8
        %s1557 = scalar_lea.vmem %s3, %s1556
      $region44: #{post_activation_3d_nobn.1} parent=39 // pred_fallthru
        _
    $region40: #{post_activation_3d_nobn.1} parent=5 // pred_fallthru
      _
  $region6: #{post_activation_3d_nobn.1} parent=0 // loop_footer
    %s13 = sadd.s32 1, %s9
  $region7: #{post_activation_3d_nobn.1} parent=0 // loop_footer_branch
    %8 = sbr.rel target = $region3
  $region8: #{post_activation_3d_nobn.1} parent=0 // loop_exit
    _

</llo_original>
